<compile_context>
chip_gen: v5e
topology: v5e:2x2
jax: 0.10.0
libtpu: 0.0.40
codegen_flags: <defaults>
</compile_context>

<pallas_src>
import functools

import jax
import jax.numpy as jnp
from jax import lax
from jax.experimental import pallas as pl
from jax.experimental.pallas import tpu as pltpu

EPS = 1e-5


def _instance_norm(x, g, b):
  # x: (C, P); normalize over P per channel, affine with g, b of shape (C, 1).
  mean = jnp.mean(x, axis=1, keepdims=True)
  xc = x - mean
  var = jnp.mean(xc * xc, axis=1, keepdims=True)
  return xc * lax.rsqrt(var + EPS) * g + b


def _wva_kernel(
    # ---- inputs -----------------------------------------------------------
    words_ref, vis_ref,
    w_words_ref, b_words_ref,      # (C, 2C), (1, 2C)  text_att | text_pivot (fused)
    w_vis_ref, b_vis_ref,          # (2C, C), (2C, 1)  visual_att | visual_pivot (fused)
    w_wl_ref, b_wl_ref,            # (C, C),  (C, 1)   weighted_lang
    w_out_ref, b_out_ref,          # (C, C),  (C, 1)   out conv (pre-BatchNorm)
    in1_g_ref, in1_b_ref,          # (C, 1)            in_norm1 affine
    in2_g_ref, in2_b_ref,          # (C, 1)            in_norm2 affine
    bn_g_ref, bn_b_ref,            # (C, 1)            BatchNorm2d affine
    alpha_ref,                     # (1, 1) SMEM       PReLU parameter
    # ---- output -----------------------------------------------------------
    out_ref,                       # (1, C, P)
    # ---- scratch (persists across the whole grid) --------------------------
    y_all, ysum, ysq, scale, shift,
    *, inv_count,
):
  phase = pl.program_id(0)
  b = pl.program_id(1)
  nb = pl.num_programs(1)
  C = w_wl_ref.shape[0]

  # ------------------------------------------------------------------ phase 0
  @pl.when(phase == 0)
  def _compute():
    @pl.when(b == 0)
    def _init():
      ysum[...] = jnp.zeros_like(ysum)
      ysq[...] = jnp.zeros_like(ysq)

    words = words_ref[0]           # (N, C)
    vis = vis_ref[0]               # (C, P)

    # Fused text projections: one (N, C) @ (C, 2C) matmul -> att | pivot.
    wp = (jnp.dot(words, w_words_ref[...], preferred_element_type=jnp.float32)
          + b_words_ref[...])      # (N, 2C)
    words_att = wp[:, :C]          # (N, C)
    words_piv = wp[:, C:]          # (N, C)

    # Fused visual projections: one (2C, C) @ (C, P) matmul -> att | pivot.
    vp = (jnp.dot(w_vis_ref[...], vis, preferred_element_type=jnp.float32)
          + b_vis_ref[...])        # (2C, P)
    vis_att = _instance_norm(vp[:C, :], in1_g_ref[...], in1_b_ref[...])  # (C, P)
    vis_piv = jnp.maximum(vp[C:, :], 0.0)                                # (C, P)

    # attn[n, p] = <words_att[n, :], vis_att[:, p]>; softmax over the word dim.
    attn = jnp.dot(words_att, vis_att, preferred_element_type=jnp.float32)  # (N, P)
    attn = attn - jnp.max(attn, axis=0, keepdims=True)
    e = jnp.exp(attn)
    attn = e * pl.reciprocal(jnp.sum(e, axis=0, keepdims=True), approx=False)

    # weighted_emb[c, p] = sum_n words_piv[n, c] * attn[n, p]
    wemb = lax.dot_general(words_piv, attn,
                           dimension_numbers=(((0,), (0,)), ((), ())),
                           preferred_element_type=jnp.float32)           # (C, P)

    # relu(in_norm2(weighted_lang(weighted_emb)))
    wlang = (jnp.dot(w_wl_ref[...], wemb, preferred_element_type=jnp.float32)
             + b_wl_ref[...])
    wlang = jnp.maximum(_instance_norm(wlang, in2_g_ref[...], in2_b_ref[...]), 0.0)

    gated = vis_piv * wlang                                              # (C, P)
    y = (jnp.dot(w_out_ref[...], gated, preferred_element_type=jnp.float32)
         + b_out_ref[...])                                               # (C, P)

    y_all[b] = y                   # keep pre-BN activation resident in VMEM
    out_ref[0] = y                 # deterministic placeholder; overwritten in phase 1
    ysum[...] += jnp.sum(y, axis=1, keepdims=True)
    ysq[...] += jnp.sum(y * y, axis=1, keepdims=True)

    # After the last batch: fold BatchNorm stats to per-channel scale/shift.
    @pl.when(b == nb - 1)
    def _fold_bn_stats():
      mean = ysum[...] * inv_count
      var = ysq[...] * inv_count - mean * mean     # biased (training-mode BN)
      ginv = bn_g_ref[...] * lax.rsqrt(var + EPS)
      scale[...] = ginv
      shift[...] = bn_b_ref[...] - mean * ginv

  # ------------------------------------------------------------------ phase 1
  @pl.when(phase == 1)
  def _normalize():
    v = y_all[b] * scale[...] + shift[...]         # (C, P)
    a = alpha_ref[0, 0]                            # PReLU scalar from SMEM
    out_ref[0] = jnp.where(v >= 0.0, v, a * v)


def _rep_spec(shape):
  nd = len(shape)
  return pl.BlockSpec(shape, lambda ph, b, _nd=nd: (0,) * _nd)


@jax.jit
def word_visual_attention(words, visual, params):
  """words: (B, N, C) f32; visual: (B, C, H, W) f32 -> (B, C, H, W) f32."""
  B, N, C = words.shape
  _, _, H, W = visual.shape
  P = H * W
  vis = visual.reshape(B, C, P)        # free reshape: NCHW is already C-major

  col = lambda v: v.reshape(C, 1)
  # Fused projection weights (att | pivot) for text and visual paths.
  w_words_t = jnp.concatenate([params["wt_att"], params["wt_piv"]], axis=0).T   # (C, 2C)
  b_words = jnp.concatenate([params["bt_att"], params["bt_piv"]], axis=1)       # (1, 2C)
  w_vis = jnp.concatenate([params["wv_att"], params["wv_piv"]], axis=0)         # (2C, C)
  b_vis = jnp.concatenate([params["bv_att"], params["bv_piv"]], axis=1).reshape(2 * C, 1)

  inputs = (
      words, vis,
      w_words_t, b_words, w_vis, b_vis,
      params["wwl"], col(params["bwl"]),
      params["wout"], col(params["bout"]),
      col(params["in1_g"]), col(params["in1_b"]),
      col(params["in2_g"]), col(params["in2_b"]),
      col(params["bn_g"]), col(params["bn_b"]),
      params["prelu"],
  )
  in_specs = (
      [pl.BlockSpec((1, N, C), lambda ph, b: (b, 0, 0)),
       pl.BlockSpec((1, C, P), lambda ph, b: (b, 0, 0))]
      + [_rep_spec(x.shape) for x in inputs[2:-1]]
      + [pl.BlockSpec(memory_space=pltpu.MemorySpace.SMEM)]   # PReLU scalar
  )

  out = pl.pallas_call(
      functools.partial(_wva_kernel, inv_count=float(1.0 / (B * P))),
      out_shape=jax.ShapeDtypeStruct((B, C, P), jnp.float32),
      grid=(2, B),                      # (phase, batch), both sequential
      in_specs=in_specs,
      out_specs=pl.BlockSpec((1, C, P), lambda ph, b: (b, 0, 0)),
      scratch_shapes=[
          pltpu.VMEM((B, C, P), jnp.float32),   # pre-BN y for all batches
          pltpu.VMEM((C, 1), jnp.float32),      # sum(y)
          pltpu.VMEM((C, 1), jnp.float32),      # sum(y*y)
          pltpu.VMEM((C, 1), jnp.float32),      # BN scale
          pltpu.VMEM((C, 1), jnp.float32),      # BN shift
      ],
      compiler_params=pltpu.CompilerParams(
          dimension_semantics=("arbitrary", "arbitrary")),
  )(*inputs)

  return out.reshape(B, C, H, W)


# --------------------------------------------------------------------------- #
# Pure-JAX reference mirroring the PyTorch NCHW forward exactly
# --------------------------------------------------------------------------- #
def reference(words, visual, p):
  B, N, C = words.shape
  _, _, H, W = visual.shape

  def conv1x1(x, w, b):  # x: (B, C, h, w)
    return jnp.einsum("dc,bchw->bdhw", w, x) + b.reshape(1, C, 1, 1)

  def inorm(x, g, bta):
    m = jnp.mean(x, axis=(2, 3), keepdims=True)
    v = jnp.mean((x - m) ** 2, axis=(2, 3), keepdims=True)
    return (x - m) * lax.rsqrt(v + EPS) * g.reshape(1, C, 1, 1) + bta.reshape(1, C, 1, 1)

  w_ = jnp.transpose(words, (0, 2, 1))[..., None]                       # (B, C, N, 1)
  words_att = jnp.transpose(conv1x1(w_, p["wt_att"], p["bt_att"])[..., 0], (0, 2, 1))
  visual_attn = inorm(conv1x1(visual, p["wv_att"], p["bv_att"]), p["in1_g"], p["in1_b"])
  visual_attn = visual_attn.reshape(B, C, H * W)
  attn = jnp.einsum("bnc,bcp->bnp", words_att, visual_attn)
  attn = jax.nn.softmax(attn, axis=1)
  words_piv = conv1x1(w_, p["wt_piv"], p["bt_piv"])[..., 0]             # (B, C, N)
  wemb = jnp.einsum("bcn,bnp->bcp", words_piv, attn).reshape(B, C, H, W)
  wlang = jax.nn.relu(inorm(conv1x1(wemb, p["wwl"], p["bwl"]), p["in2_g"], p["in2_b"]))
  vpiv = jax.nn.relu(conv1x1(visual, p["wv_piv"], p["bv_piv"]))
  gated = vpiv * wlang
  y = conv1x1(gated, p["wout"], p["bout"])
  # BatchNorm2d, training-mode batch statistics (module default is train()).
  m = jnp.mean(y, axis=(0, 2, 3), keepdims=True)
  v = jnp.mean((y - m) ** 2, axis=(0, 2, 3), keepdims=True)
  yn = (y - m) * lax.rsqrt(v + EPS) * p["bn_g"].reshape(1, C, 1, 1) + p["bn_b"].reshape(1, C, 1, 1)
  a = p["prelu"][0, 0]
  return jnp.where(yn >= 0, yn, a * yn)


# --------------------------------------------------------------------------- #
# Deterministic parameter init + run
# --------------------------------------------------------------------------- #
def make_params(key, C):
  ks = jax.random.split(key, 16)
  def conv_wb(kw, kb):
    w = jax.random.normal(kw, (C, C), jnp.float32) / jnp.sqrt(C).astype(jnp.float32)
    b = 0.1 * jax.random.normal(kb, (1, C), jnp.float32)
    return w, b
  p = {}
  p["wt_att"], p["bt_att"] = conv_wb(ks[0], ks[1])
  p["wv_att"], p["bv_att"] = conv_wb(ks[2], ks[3])
  p["wt_piv"], p["bt_piv"] = conv_wb(ks[4], ks[5])
  p["wv_piv"], p["bv_piv"] = conv_wb(ks[6], ks[7])
  p["wwl"],    p["bwl"]    = conv_wb(ks[8], ks[9])
  p["wout"],   p["bout"]   = conv_wb(ks[10], ks[11])
  p["in1_g"] = 1.0 + 0.1 * jax.random.normal(ks[12], (1, C), jnp.float32)
  p["in1_b"] = 0.1 * jax.random.normal(ks[13], (1, C), jnp.float32)
  p["in2_g"] = 1.0 + 0.1 * jax.random.normal(ks[14], (1, C), jnp.float32)
  p["in2_b"] = 0.1 * jax.random.normal(ks[15], (1, C), jnp.float32)
  p["bn_g"] = jnp.ones((1, C), jnp.float32)
  p["bn_b"] = jnp.zeros((1, C), jnp.float32)
  p["prelu"] = jnp.full((1, 1), 0.25, jnp.float32)   # PReLU default single parameter
  return p


if __name__ == "__main__":
  B, N, C, H, W = 2, 8, 32, 16, 16
  key = jax.random.PRNGKey(0)
  k_w, k_v, k_p = jax.random.split(key, 3)

  words = jax.random.normal(k_w, (B, N, C), jnp.float32)
  visual = jax.random.normal(k_v, (B, C, H, W), jnp.float32)
  params = make_params(k_p, C)

  out = jax.block_until_ready(word_visual_attention(words, visual, params))
  ref = jax.block_until_ready(reference(words, visual, params))

  assert out.shape == (B, C, H, W)
  err = float(jnp.max(jnp.abs(out - ref)))
  assert jnp.allclose(out, ref, rtol=1e-3, atol=1e-3), err

  print("KERNEL_OK")
</pallas_src>

<mosaic_0001>
module attributes {stable_mosaic.version = 11 : i64} {
  func.func @_wva_kernel(%arg0: i32, %arg1: i32, %arg2: memref<1x8x32xf32, #tpu.memory_space<vmem>>, %arg3: memref<1x32x256xf32, #tpu.memory_space<vmem>>, %arg4: memref<32x64xf32, #tpu.memory_space<vmem>>, %arg5: memref<1x64xf32, #tpu.memory_space<vmem>>, %arg6: memref<64x32xf32, #tpu.memory_space<vmem>>, %arg7: memref<64x1xf32, #tpu.memory_space<vmem>>, %arg8: memref<32x32xf32, #tpu.memory_space<vmem>>, %arg9: memref<32x1xf32, #tpu.memory_space<vmem>>, %arg10: memref<32x32xf32, #tpu.memory_space<vmem>>, %arg11: memref<32x1xf32, #tpu.memory_space<vmem>>, %arg12: memref<32x1xf32, #tpu.memory_space<vmem>>, %arg13: memref<32x1xf32, #tpu.memory_space<vmem>>, %arg14: memref<32x1xf32, #tpu.memory_space<vmem>>, %arg15: memref<32x1xf32, #tpu.memory_space<vmem>>, %arg16: memref<32x1xf32, #tpu.memory_space<vmem>>, %arg17: memref<32x1xf32, #tpu.memory_space<vmem>>, %arg18: memref<1x1xf32, #tpu.memory_space<smem>>, %arg19: memref<1x32x256xf32, #tpu.memory_space<vmem>>, %arg20: memref<2x32x256xf32, #tpu.memory_space<vmem>>, %arg21: memref<32x1xf32, #tpu.memory_space<vmem>>, %arg22: memref<32x1xf32, #tpu.memory_space<vmem>>, %arg23: memref<32x1xf32, #tpu.memory_space<vmem>>, %arg24: memref<32x1xf32, #tpu.memory_space<vmem>>) attributes {dimension_semantics = [#tpu.dimension_semantics<arbitrary>, #tpu.dimension_semantics<arbitrary>], iteration_bounds = array<i64: 2, 2>, scalar_prefetch = 0 : i64, scratch_operands = 5 : i64, tpu.core_type = #tpu.core_type<tc>, window_params = [{transform_indices = @transform_0, window_bounds = array<i64: 1, 8, 32>}, {transform_indices = @transform_1, window_bounds = array<i64: 1, 32, 256>}, {pipeline_mode = #tpu.pipeline_mode<synchronous>, transform_indices = @transform_2, window_bounds = array<i64: 32, 64>}, {pipeline_mode = #tpu.pipeline_mode<synchronous>, transform_indices = @transform_3, window_bounds = array<i64: 1, 64>}, {pipeline_mode = #tpu.pipeline_mode<synchronous>, transform_indices = @transform_4, window_bounds = array<i64: 64, 32>}, {pipeline_mode = #tpu.pipeline_mode<synchronous>, transform_indices = @transform_5, window_bounds = array<i64: 64, 1>}, {pipeline_mode = #tpu.pipeline_mode<synchronous>, transform_indices = @transform_6, window_bounds = array<i64: 32, 32>}, {pipeline_mode = #tpu.pipeline_mode<synchronous>, transform_indices = @transform_7, window_bounds = array<i64: 32, 1>}, {pipeline_mode = #tpu.pipeline_mode<synchronous>, transform_indices = @transform_8, window_bounds = array<i64: 32, 32>}, {pipeline_mode = #tpu.pipeline_mode<synchronous>, transform_indices = @transform_9, window_bounds = array<i64: 32, 1>}, {pipeline_mode = #tpu.pipeline_mode<synchronous>, transform_indices = @transform_10, window_bounds = array<i64: 32, 1>}, {pipeline_mode = #tpu.pipeline_mode<synchronous>, transform_indices = @transform_11, window_bounds = array<i64: 32, 1>}, {pipeline_mode = #tpu.pipeline_mode<synchronous>, transform_indices = @transform_12, window_bounds = array<i64: 32, 1>}, {pipeline_mode = #tpu.pipeline_mode<synchronous>, transform_indices = @transform_13, window_bounds = array<i64: 32, 1>}, {pipeline_mode = #tpu.pipeline_mode<synchronous>, transform_indices = @transform_14, window_bounds = array<i64: 32, 1>}, {pipeline_mode = #tpu.pipeline_mode<synchronous>, transform_indices = @transform_15, window_bounds = array<i64: 32, 1>}, {transform_indices = @transform_16, window_bounds = array<i64: 1, 1>}, {transform_indices = @transform_17, window_bounds = array<i64: 1, 32, 256>}]} {
    %c0_i32 = arith.constant 0 : i32
    %0 = arith.cmpi eq, %arg0, %c0_i32 : i32
    %1 = arith.extui %0 : i1 to i32
    %c0_i32_0 = arith.constant 0 : i32
    %2 = arith.cmpi ne, %1, %c0_i32_0 : i32
    scf.if %2 {
      %c0_i32_2 = arith.constant 0 : i32
      %6 = arith.cmpi eq, %arg1, %c0_i32_2 : i32
      %7 = arith.extui %6 : i1 to i32
      %c0_i32_3 = arith.constant 0 : i32
      %8 = arith.cmpi ne, %7, %c0_i32_3 : i32
      scf.if %8 {
        %cst_69 = arith.constant 0.000000e+00 : f32
        %119 = vector.broadcast %cst_69 : f32 to vector<32x1xf32>
        %c0_70 = arith.constant 0 : index
        %c0_71 = arith.constant 0 : index
        %120 = vector.load %arg21[%c0_70, %c0_71] : memref<32x1xf32, #tpu.memory_space<vmem>>, vector<32x1xf32>
        tpu.vector_store %arg21[%c0_70, %c0_71], %119 {strides = array<i32>} : memref<32x1xf32, #tpu.memory_space<vmem>>, vector<32x1xf32>,
        %cst_72 = arith.constant 0.000000e+00 : f32
        %121 = vector.broadcast %cst_72 : f32 to vector<32x1xf32>
        %c0_73 = arith.constant 0 : index
        %c0_74 = arith.constant 0 : index
        %122 = vector.load %arg22[%c0_73, %c0_74] : memref<32x1xf32, #tpu.memory_space<vmem>>, vector<32x1xf32>
        tpu.vector_store %arg22[%c0_73, %c0_74], %121 {strides = array<i32>} : memref<32x1xf32, #tpu.memory_space<vmem>>, vector<32x1xf32>,
      } else {
      }
      %c0 = arith.constant 0 : index
      %c0_4 = arith.constant 0 : index
      %c0_5 = arith.constant 0 : index
      %9 = vector.load %arg2[%c0, %c0_4, %c0_5] : memref<1x8x32xf32, #tpu.memory_space<vmem>>, vector<1x8x32xf32>
      %10 = vector.shape_cast %9 : vector<1x8x32xf32> to vector<8x32xf32>
      %c0_6 = arith.constant 0 : index
      %c0_7 = arith.constant 0 : index
      %c0_8 = arith.constant 0 : index
      %11 = vector.load %arg3[%c0_6, %c0_7, %c0_8] : memref<1x32x256xf32, #tpu.memory_space<vmem>>, vector<1x32x256xf32>
      %12 = vector.shape_cast %11 : vector<1x32x256xf32> to vector<32x256xf32>
      %c0_9 = arith.constant 0 : index
      %c0_10 = arith.constant 0 : index
      %13 = vector.load %arg4[%c0_9, %c0_10] : memref<32x64xf32, #tpu.memory_space<vmem>>, vector<32x64xf32>
      %cst = arith.constant dense<0.000000e+00> : vector<8x64xf32>
      %14 = tpu.matmul %10, %13, %cst {dimension_numbers = #tpu.dot_dimension_numbers<[1], [0], [0], [1], [0, 0, 1, 1], [], []>} : vector<8x32xf32>, vector<32x64xf32>, vector<8x64xf32> -> vector<8x64xf32>
      %c0_11 = arith.constant 0 : index
      %c0_12 = arith.constant 0 : index
      %15 = vector.load %arg5[%c0_11, %c0_12] : memref<1x64xf32, #tpu.memory_space<vmem>>, vector<1x64xf32>
      %16 = vector.broadcast %15 : vector<1x64xf32> to vector<8x64xf32>
      %17 = arith.addf %14, %16 : vector<8x64xf32>
      %18 = vector.extract_strided_slice %17 {offsets = [0, 0], sizes = [8, 32], strides = [1, 1]} : vector<8x64xf32> to vector<8x32xf32>
      %19 = vector.extract_strided_slice %17 {offsets = [0, 32], sizes = [8, 32], strides = [1, 1]} : vector<8x64xf32> to vector<8x32xf32>
      %c0_13 = arith.constant 0 : index
      %c0_14 = arith.constant 0 : index
      %20 = vector.load %arg6[%c0_13, %c0_14] : memref<64x32xf32, #tpu.memory_space<vmem>>, vector<64x32xf32>
      %cst_15 = arith.constant dense<0.000000e+00> : vector<64x256xf32>
      %21 = tpu.matmul %20, %12, %cst_15 {dimension_numbers = #tpu.dot_dimension_numbers<[1], [0], [0], [1], [0, 0, 1, 1], [], []>} : vector<64x32xf32>, vector<32x256xf32>, vector<64x256xf32> -> vector<64x256xf32>
      %c0_16 = arith.constant 0 : index
      %c0_17 = arith.constant 0 : index
      %22 = vector.load %arg7[%c0_16, %c0_17] : memref<64x1xf32, #tpu.memory_space<vmem>>, vector<64x1xf32>
      %23 = vector.broadcast %22 : vector<64x1xf32> to vector<64x256xf32>
      %24 = arith.addf %21, %23 : vector<64x256xf32>
      %25 = vector.extract_strided_slice %24 {offsets = [0, 0], sizes = [32, 256], strides = [1, 1]} : vector<64x256xf32> to vector<32x256xf32>
      %c0_18 = arith.constant 0 : index
      %c0_19 = arith.constant 0 : index
      %26 = vector.load %arg12[%c0_18, %c0_19] : memref<32x1xf32, #tpu.memory_space<vmem>>, vector<32x1xf32>
      %c0_20 = arith.constant 0 : index
      %c0_21 = arith.constant 0 : index
      %27 = vector.load %arg13[%c0_20, %c0_21] : memref<32x1xf32, #tpu.memory_space<vmem>>, vector<32x1xf32>
      %cst_22 = arith.constant dense<0.000000e+00> : vector<32xf32>
      %28 = vector.multi_reduction <add>, %25, %cst_22 [1] : vector<32x256xf32> to vector<32xf32>
      %29 = vector.shape_cast %28 : vector<32xf32> to vector<32x1xf32>
      %cst_23 = arith.constant 2.560000e+02 : f32
      %30 = vector.broadcast %cst_23 : f32 to vector<32x1xf32>
      %31 = arith.divf %29, %30 : vector<32x1xf32>
      %32 = vector.broadcast %31 : vector<32x1xf32> to vector<32x256xf32>
      %33 = arith.subf %25, %32 : vector<32x256xf32>
      %34 = arith.mulf %33, %33 : vector<32x256xf32>
      %cst_24 = arith.constant dense<0.000000e+00> : vector<32xf32>
      %35 = vector.multi_reduction <add>, %34, %cst_24 [1] : vector<32x256xf32> to vector<32xf32>
      %36 = vector.shape_cast %35 : vector<32xf32> to vector<32x1xf32>
      %cst_25 = arith.constant 2.560000e+02 : f32
      %37 = vector.broadcast %cst_25 : f32 to vector<32x1xf32>
      %38 = arith.divf %36, %37 : vector<32x1xf32>
      %cst_26 = arith.constant 9.99999974E-6 : f32
      %39 = vector.broadcast %cst_26 : f32 to vector<32x1xf32>
      %40 = arith.addf %38, %39 : vector<32x1xf32>
      %41 = math.rsqrt %40 : vector<32x1xf32>
      %42 = vector.broadcast %41 : vector<32x1xf32> to vector<32x256xf32>
      %43 = arith.mulf %33, %42 : vector<32x256xf32>
      %44 = vector.broadcast %26 : vector<32x1xf32> to vector<32x256xf32>
      %45 = arith.mulf %43, %44 : vector<32x256xf32>
      %46 = vector.broadcast %27 : vector<32x1xf32> to vector<32x256xf32>
      %47 = arith.addf %45, %46 : vector<32x256xf32>
      %48 = vector.extract_strided_slice %24 {offsets = [32, 0], sizes = [32, 256], strides = [1, 1]} : vector<64x256xf32> to vector<32x256xf32>
      %cst_27 = arith.constant 0.000000e+00 : f32
      %49 = vector.broadcast %cst_27 : f32 to vector<32x256xf32>
      %50 = arith.maximumf %48, %49 : vector<32x256xf32>
      %cst_28 = arith.constant dense<0.000000e+00> : vector<8x256xf32>
      %51 = tpu.matmul %18, %47, %cst_28 {dimension_numbers = #tpu.dot_dimension_numbers<[1], [0], [0], [1], [0, 0, 1, 1], [], []>} : vector<8x32xf32>, vector<32x256xf32>, vector<8x256xf32> -> vector<8x256xf32>
      %cst_29 = arith.constant dense<0xFF800000> : vector<256xf32>
      %52 = vector.multi_reduction <maximumf>, %51, %cst_29 [0] : vector<8x256xf32> to vector<256xf32>
      %53 = vector.shape_cast %52 : vector<256xf32> to vector<1x256xf32>
      %54 = vector.broadcast %53 : vector<1x256xf32> to vector<8x256xf32>
      %55 = arith.subf %51, %54 : vector<8x256xf32>
      %56 = math.exp %55 : vector<8x256xf32>
      %cst_30 = arith.constant dense<0.000000e+00> : vector<256xf32>
      %57 = vector.multi_reduction <add>, %56, %cst_30 [0] : vector<8x256xf32> to vector<256xf32>
      %58 = vector.shape_cast %57 : vector<256xf32> to vector<1x256xf32>
      %59 = tpu.reciprocal %58 : vector<1x256xf32> -> vector<1x256xf32>
      %60 = vector.broadcast %59 : vector<1x256xf32> to vector<8x256xf32>
      %61 = arith.mulf %56, %60 : vector<8x256xf32>
      %cst_31 = arith.constant dense<0.000000e+00> : vector<32x256xf32>
      %62 = tpu.matmul %19, %61, %cst_31 {dimension_numbers = #tpu.dot_dimension_numbers<[0], [0], [1], [1], [0, 1, 1, 1], [], []>} : vector<8x32xf32>, vector<8x256xf32>, vector<32x256xf32> -> vector<32x256xf32>
      %c0_32 = arith.constant 0 : index
      %c0_33 = arith.constant 0 : index
      %63 = vector.load %arg8[%c0_32, %c0_33] : memref<32x32xf32, #tpu.memory_space<vmem>>, vector<32x32xf32>
      %cst_34 = arith.constant dense<0.000000e+00> : vector<32x256xf32>
      %64 = tpu.matmul %63, %62, %cst_34 {dimension_numbers = #tpu.dot_dimension_numbers<[1], [0], [0], [1], [0, 0, 1, 1], [], []>} : vector<32x32xf32>, vector<32x256xf32>, vector<32x256xf32> -> vector<32x256xf32>
      %c0_35 = arith.constant 0 : index
      %c0_36 = arith.constant 0 : index
      %65 = vector.load %arg9[%c0_35, %c0_36] : memref<32x1xf32, #tpu.memory_space<vmem>>, vector<32x1xf32>
      %66 = vector.broadcast %65 : vector<32x1xf32> to vector<32x256xf32>
      %67 = arith.addf %64, %66 : vector<32x256xf32>
      %c0_37 = arith.constant 0 : index
      %c0_38 = arith.constant 0 : index
      %68 = vector.load %arg14[%c0_37, %c0_38] : memref<32x1xf32, #tpu.memory_space<vmem>>, vector<32x1xf32>
      %c0_39 = arith.constant 0 : index
      %c0_40 = arith.constant 0 : index
      %69 = vector.load %arg15[%c0_39, %c0_40] : memref<32x1xf32, #tpu.memory_space<vmem>>, vector<32x1xf32>
      %cst_41 = arith.constant dense<0.000000e+00> : vector<32xf32>
      %70 = vector.multi_reduction <add>, %67, %cst_41 [1] : vector<32x256xf32> to vector<32xf32>
      %71 = vector.shape_cast %70 : vector<32xf32> to vector<32x1xf32>
      %cst_42 = arith.constant 2.560000e+02 : f32
      %72 = vector.broadcast %cst_42 : f32 to vector<32x1xf32>
      %73 = arith.divf %71, %72 : vector<32x1xf32>
      %74 = vector.broadcast %73 : vector<32x1xf32> to vector<32x256xf32>
      %75 = arith.subf %67, %74 : vector<32x256xf32>
      %76 = arith.mulf %75, %75 : vector<32x256xf32>
      %cst_43 = arith.constant dense<0.000000e+00> : vector<32xf32>
      %77 = vector.multi_reduction <add>, %76, %cst_43 [1] : vector<32x256xf32> to vector<32xf32>
      %78 = vector.shape_cast %77 : vector<32xf32> to vector<32x1xf32>
      %cst_44 = arith.constant 2.560000e+02 : f32
      %79 = vector.broadcast %cst_44 : f32 to vector<32x1xf32>
      %80 = arith.divf %78, %79 : vector<32x1xf32>
      %cst_45 = arith.constant 9.99999974E-6 : f32
      %81 = vector.broadcast %cst_45 : f32 to vector<32x1xf32>
      %82 = arith.addf %80, %81 : vector<32x1xf32>
      %83 = math.rsqrt %82 : vector<32x1xf32>
      %84 = vector.broadcast %83 : vector<32x1xf32> to vector<32x256xf32>
      %85 = arith.mulf %75, %84 : vector<32x256xf32>
      %86 = vector.broadcast %68 : vector<32x1xf32> to vector<32x256xf32>
      %87 = arith.mulf %85, %86 : vector<32x256xf32>
      %88 = vector.broadcast %69 : vector<32x1xf32> to vector<32x256xf32>
      %89 = arith.addf %87, %88 : vector<32x256xf32>
      %cst_46 = arith.constant 0.000000e+00 : f32
      %90 = vector.broadcast %cst_46 : f32 to vector<32x256xf32>
      %91 = arith.maximumf %89, %90 : vector<32x256xf32>
      %92 = arith.mulf %50, %91 : vector<32x256xf32>
      %c0_47 = arith.constant 0 : index
      %c0_48 = arith.constant 0 : index
      %93 = vector.load %arg10[%c0_47, %c0_48] : memref<32x32xf32, #tpu.memory_space<vmem>>, vector<32x32xf32>
      %cst_49 = arith.constant dense<0.000000e+00> : vector<32x256xf32>
      %94 = tpu.matmul %93, %92, %cst_49 {dimension_numbers = #tpu.dot_dimension_numbers<[1], [0], [0], [1], [0, 0, 1, 1], [], []>} : vector<32x32xf32>, vector<32x256xf32>, vector<32x256xf32> -> vector<32x256xf32>
      %c0_50 = arith.constant 0 : index
      %c0_51 = arith.constant 0 : index
      %95 = vector.load %arg11[%c0_50, %c0_51] : memref<32x1xf32, #tpu.memory_space<vmem>>, vector<32x1xf32>
      %96 = vector.broadcast %95 : vector<32x1xf32> to vector<32x256xf32>
      %97 = arith.addf %94, %96 : vector<32x256xf32>
      %98 = arith.index_cast %arg1 : i32 to index
      %c0_52 = arith.constant 0 : index
      %c0_53 = arith.constant 0 : index
      %99 = vector.load %arg20[%98, %c0_52, %c0_53] : memref<2x32x256xf32, #tpu.memory_space<vmem>>, vector<1x32x256xf32>
      %100 = vector.shape_cast %99 : vector<1x32x256xf32> to vector<32x256xf32>
      %101 = vector.shape_cast %97 : vector<32x256xf32> to vector<1x32x256xf32>
      tpu.vector_store %arg20[%98, %c0_52, %c0_53], %101 {strides = array<i32>} : memref<2x32x256xf32, #tpu.memory_space<vmem>>, vector<1x32x256xf32>,
      %c0_54 = arith.constant 0 : index
      %c0_55 = arith.constant 0 : index
      %c0_56 = arith.constant 0 : index
      %102 = vector.load %arg19[%c0_54, %c0_55, %c0_56] : memref<1x32x256xf32, #tpu.memory_space<vmem>>, vector<1x32x256xf32>
      %103 = vector.shape_cast %102 : vector<1x32x256xf32> to vector<32x256xf32>
      %104 = vector.shape_cast %97 : vector<32x256xf32> to vector<1x32x256xf32>
      tpu.vector_store %arg19[%c0_54, %c0_55, %c0_56], %104 {strides = array<i32>} : memref<1x32x256xf32, #tpu.memory_space<vmem>>, vector<1x32x256xf32>,
      %c0_57 = arith.constant 0 : index
      %c0_58 = arith.constant 0 : index
      %105 = vector.load %arg21[%c0_57, %c0_58] : memref<32x1xf32, #tpu.memory_space<vmem>>, vector<32x1xf32>
      %cst_59 = arith.constant dense<0.000000e+00> : vector<32xf32>
      %106 = vector.multi_reduction <add>, %97, %cst_59 [1] : vector<32x256xf32> to vector<32xf32>
      %107 = vector.shape_cast %106 : vector<32xf32> to vector<32x1xf32>
      %108 = arith.addf %105, %107 : vector<32x1xf32>
      %c0_60 = arith.constant 0 : index
      %c0_61 = arith.constant 0 : index
      %109 = vector.load %arg21[%c0_60, %c0_61] : memref<32x1xf32, #tpu.memory_space<vmem>>, vector<32x1xf32>
      tpu.vector_store %arg21[%c0_60, %c0_61], %108 {strides = array<i32>} : memref<32x1xf32, #tpu.memory_space<vmem>>, vector<32x1xf32>,
      %c0_62 = arith.constant 0 : index
      %c0_63 = arith.constant 0 : index
      %110 = vector.load %arg22[%c0_62, %c0_63] : memref<32x1xf32, #tpu.memory_space<vmem>>, vector<32x1xf32>
      %111 = arith.mulf %97, %97 : vector<32x256xf32>
      %cst_64 = arith.constant dense<0.000000e+00> : vector<32xf32>
      %112 = vector.multi_reduction <add>, %111, %cst_64 [1] : vector<32x256xf32> to vector<32xf32>
      %113 = vector.shape_cast %112 : vector<32xf32> to vector<32x1xf32>
      %114 = arith.addf %110, %113 : vector<32x1xf32>
      %c0_65 = arith.constant 0 : index
      %c0_66 = arith.constant 0 : index
      %115 = vector.load %arg22[%c0_65, %c0_66] : memref<32x1xf32, #tpu.memory_space<vmem>>, vector<32x1xf32>
      tpu.vector_store %arg22[%c0_65, %c0_66], %114 {strides = array<i32>} : memref<32x1xf32, #tpu.memory_space<vmem>>, vector<32x1xf32>,
      %c1_i32_67 = arith.constant 1 : i32
      %116 = arith.cmpi eq, %arg1, %c1_i32_67 : i32
      %117 = arith.extui %116 : i1 to i32
      %c0_i32_68 = arith.constant 0 : i32
      %118 = arith.cmpi ne, %117, %c0_i32_68 : i32
      scf.if %118 {
        %c0_69 = arith.constant 0 : index
        %c0_70 = arith.constant 0 : index
        %119 = vector.load %arg21[%c0_69, %c0_70] : memref<32x1xf32, #tpu.memory_space<vmem>>, vector<32x1xf32>
        %cst_71 = arith.constant 0.001953125 : f32
        %120 = vector.broadcast %cst_71 : f32 to vector<32x1xf32>
        %121 = arith.mulf %119, %120 : vector<32x1xf32>
        %c0_72 = arith.constant 0 : index
        %c0_73 = arith.constant 0 : index
        %122 = vector.load %arg22[%c0_72, %c0_73] : memref<32x1xf32, #tpu.memory_space<vmem>>, vector<32x1xf32>
        %cst_74 = arith.constant 0.001953125 : f32
        %123 = vector.broadcast %cst_74 : f32 to vector<32x1xf32>
        %124 = arith.mulf %122, %123 : vector<32x1xf32>
        %125 = arith.mulf %121, %121 : vector<32x1xf32>
        %126 = arith.subf %124, %125 : vector<32x1xf32>
        %c0_75 = arith.constant 0 : index
        %c0_76 = arith.constant 0 : index
        %127 = vector.load %arg16[%c0_75, %c0_76] : memref<32x1xf32, #tpu.memory_space<vmem>>, vector<32x1xf32>
        %cst_77 = arith.constant 9.99999974E-6 : f32
        %128 = vector.broadcast %cst_77 : f32 to vector<32x1xf32>
        %129 = arith.addf %126, %128 : vector<32x1xf32>
        %130 = math.rsqrt %129 : vector<32x1xf32>
        %131 = arith.mulf %127, %130 : vector<32x1xf32>
        %c0_78 = arith.constant 0 : index
        %c0_79 = arith.constant 0 : index
        %132 = vector.load %arg23[%c0_78, %c0_79] : memref<32x1xf32, #tpu.memory_space<vmem>>, vector<32x1xf32>
        tpu.vector_store %arg23[%c0_78, %c0_79], %131 {strides = array<i32>} : memref<32x1xf32, #tpu.memory_space<vmem>>, vector<32x1xf32>,
        %c0_80 = arith.constant 0 : index
        %c0_81 = arith.constant 0 : index
        %133 = vector.load %arg17[%c0_80, %c0_81] : memref<32x1xf32, #tpu.memory_space<vmem>>, vector<32x1xf32>
        %134 = arith.mulf %121, %131 : vector<32x1xf32>
        %135 = arith.subf %133, %134 : vector<32x1xf32>
        %c0_82 = arith.constant 0 : index
        %c0_83 = arith.constant 0 : index
        %136 = vector.load %arg24[%c0_82, %c0_83] : memref<32x1xf32, #tpu.memory_space<vmem>>, vector<32x1xf32>
        tpu.vector_store %arg24[%c0_82, %c0_83], %135 {strides = array<i32>} : memref<32x1xf32, #tpu.memory_space<vmem>>, vector<32x1xf32>,
      } else {
      }
    } else {
    }
    %c1_i32 = arith.constant 1 : i32
    %3 = arith.cmpi eq, %arg0, %c1_i32 : i32
    %4 = arith.extui %3 : i1 to i32
    %c0_i32_1 = arith.constant 0 : i32
    %5 = arith.cmpi ne, %4, %c0_i32_1 : i32
    scf.if %5 {
      %6 = arith.index_cast %arg1 : i32 to index
      %c0 = arith.constant 0 : index
      %c0_2 = arith.constant 0 : index
      %7 = vector.load %arg20[%6, %c0, %c0_2] : memref<2x32x256xf32, #tpu.memory_space<vmem>>, vector<1x32x256xf32>
      %8 = vector.shape_cast %7 : vector<1x32x256xf32> to vector<32x256xf32>
      %c0_3 = arith.constant 0 : index
      %c0_4 = arith.constant 0 : index
      %9 = vector.load %arg23[%c0_3, %c0_4] : memref<32x1xf32, #tpu.memory_space<vmem>>, vector<32x1xf32>
      %10 = vector.broadcast %9 : vector<32x1xf32> to vector<32x256xf32>
      %11 = arith.mulf %8, %10 : vector<32x256xf32>
      %c0_5 = arith.constant 0 : index
      %c0_6 = arith.constant 0 : index
      %12 = vector.load %arg24[%c0_5, %c0_6] : memref<32x1xf32, #tpu.memory_space<vmem>>, vector<32x1xf32>
      %13 = vector.broadcast %12 : vector<32x1xf32> to vector<32x256xf32>
      %14 = arith.addf %11, %13 : vector<32x256xf32>
      %c0_7 = arith.constant 0 : index
      %c0_8 = arith.constant 0 : index
      %15 = memref.load %arg18[%c0_7, %c0_8] : memref<1x1xf32, #tpu.memory_space<smem>>
      %cst = arith.constant 0.000000e+00 : f32
      %16 = vector.broadcast %cst : f32 to vector<32x256xf32>
      %17 = arith.cmpf oge, %14, %16 : vector<32x256xf32>
      %18 = vector.broadcast %15 : f32 to vector<32x256xf32>
      %19 = arith.mulf %18, %14 : vector<32x256xf32>
      %20 = arith.select %17, %14, %19 : vector<32x256xi1>, vector<32x256xf32>
      %c0_9 = arith.constant 0 : index
      %c0_10 = arith.constant 0 : index
      %c0_11 = arith.constant 0 : index
      %21 = vector.load %arg19[%c0_9, %c0_10, %c0_11] : memref<1x32x256xf32, #tpu.memory_space<vmem>>, vector<1x32x256xf32>
      %22 = vector.shape_cast %21 : vector<1x32x256xf32> to vector<32x256xf32>
      %23 = vector.shape_cast %20 : vector<32x256xf32> to vector<1x32x256xf32>
      tpu.vector_store %arg19[%c0_9, %c0_10, %c0_11], %23 {strides = array<i32>} : memref<1x32x256xf32, #tpu.memory_space<vmem>>, vector<1x32x256xf32>,
    } else {
    }
    return
  }
  func.func @transform_0(%arg0: i32, %arg1: i32) -> (i32, i32, i32) {
    %c0_i32 = arith.constant 0 : i32
    %c0_i32_0 = arith.constant 0 : i32
    %c0_i32_1 = arith.constant 0 : i32
    return %arg1, %c0_i32, %c0_i32_0 : i32, i32, i32
  }
  func.func @transform_1(%arg0: i32, %arg1: i32) -> (i32, i32, i32) {
    %c0_i32 = arith.constant 0 : i32
    %c0_i32_0 = arith.constant 0 : i32
    %c0_i32_1 = arith.constant 0 : i32
    return %arg1, %c0_i32, %c0_i32_0 : i32, i32, i32
  }
  func.func @transform_2(%arg0: i32, %arg1: i32) -> (i32, i32) {
    %c0_i32 = arith.constant 0 : i32
    %c0_i32_0 = arith.constant 0 : i32
    %c0_i32_1 = arith.constant 0 : i32
    return %c0_i32, %c0_i32_0 : i32, i32
  }
  func.func @transform_3(%arg0: i32, %arg1: i32) -> (i32, i32) {
    %c0_i32 = arith.constant 0 : i32
    %c0_i32_0 = arith.constant 0 : i32
    %c0_i32_1 = arith.constant 0 : i32
    return %c0_i32, %c0_i32_0 : i32, i32
  }
  func.func @transform_4(%arg0: i32, %arg1: i32) -> (i32, i32) {
    %c0_i32 = arith.constant 0 : i32
    %c0_i32_0 = arith.constant 0 : i32
    %c0_i32_1 = arith.constant 0 : i32
    return %c0_i32, %c0_i32_0 : i32, i32
  }
  func.func @transform_5(%arg0: i32, %arg1: i32) -> (i32, i32) {
    %c0_i32 = arith.constant 0 : i32
    %c0_i32_0 = arith.constant 0 : i32
    %c0_i32_1 = arith.constant 0 : i32
    return %c0_i32, %c0_i32_0 : i32, i32
  }
  func.func @transform_6(%arg0: i32, %arg1: i32) -> (i32, i32) {
    %c0_i32 = arith.constant 0 : i32
    %c0_i32_0 = arith.constant 0 : i32
    %c0_i32_1 = arith.constant 0 : i32
    return %c0_i32, %c0_i32_0 : i32, i32
  }
  func.func @transform_7(%arg0: i32, %arg1: i32) -> (i32, i32) {
    %c0_i32 = arith.constant 0 : i32
    %c0_i32_0 = arith.constant 0 : i32
    %c0_i32_1 = arith.constant 0 : i32
    return %c0_i32, %c0_i32_0 : i32, i32
  }
  func.func @transform_8(%arg0: i32, %arg1: i32) -> (i32, i32) {
    %c0_i32 = arith.constant 0 : i32
    %c0_i32_0 = arith.constant 0 : i32
    %c0_i32_1 = arith.constant 0 : i32
    return %c0_i32, %c0_i32_0 : i32, i32
  }
  func.func @transform_9(%arg0: i32, %arg1: i32) -> (i32, i32) {
    %c0_i32 = arith.constant 0 : i32
    %c0_i32_0 = arith.constant 0 : i32
    %c0_i32_1 = arith.constant 0 : i32
    return %c0_i32, %c0_i32_0 : i32, i32
  }
  func.func @transform_10(%arg0: i32, %arg1: i32) -> (i32, i32) {
    %c0_i32 = arith.constant 0 : i32
    %c0_i32_0 = arith.constant 0 : i32
    %c0_i32_1 = arith.constant 0 : i32
    return %c0_i32, %c0_i32_0 : i32, i32
  }
  func.func @transform_11(%arg0: i32, %arg1: i32) -> (i32, i32) {
    %c0_i32 = arith.constant 0 : i32
    %c0_i32_0 = arith.constant 0 : i32
    %c0_i32_1 = arith.constant 0 : i32
    return %c0_i32, %c0_i32_0 : i32, i32
  }
  func.func @transform_12(%arg0: i32, %arg1: i32) -> (i32, i32) {
    %c0_i32 = arith.constant 0 : i32
    %c0_i32_0 = arith.constant 0 : i32
    %c0_i32_1 = arith.constant 0 : i32
    return %c0_i32, %c0_i32_0 : i32, i32
  }
  func.func @transform_13(%arg0: i32, %arg1: i32) -> (i32, i32) {
    %c0_i32 = arith.constant 0 : i32
    %c0_i32_0 = arith.constant 0 : i32
    %c0_i32_1 = arith.constant 0 : i32
    return %c0_i32, %c0_i32_0 : i32, i32
  }
  func.func @transform_14(%arg0: i32, %arg1: i32) -> (i32, i32) {
    %c0_i32 = arith.constant 0 : i32
    %c0_i32_0 = arith.constant 0 : i32
    %c0_i32_1 = arith.constant 0 : i32
    return %c0_i32, %c0_i32_0 : i32, i32
  }
  func.func @transform_15(%arg0: i32, %arg1: i32) -> (i32, i32) {
    %c0_i32 = arith.constant 0 : i32
    %c0_i32_0 = arith.constant 0 : i32
    %c0_i32_1 = arith.constant 0 : i32
    return %c0_i32, %c0_i32_0 : i32, i32
  }
  func.func @transform_16(%arg0: i32, %arg1: i32) -> (i32, i32) {
    %c0_i32 = arith.constant 0 : i32
    %c0_i32_0 = arith.constant 0 : i32
    %c0_i32_1 = arith.constant 0 : i32
    return %c0_i32, %c0_i32_0 : i32, i32
  }
  func.func @transform_17(%arg0: i32, %arg1: i32) -> (i32, i32, i32) {
    %c0_i32 = arith.constant 0 : i32
    %c0_i32_0 = arith.constant 0 : i32
    %c0_i32_1 = arith.constant 0 : i32
    return %arg1, %c0_i32, %c0_i32_0 : i32, i32, i32
  }
}

</mosaic_0001>

<llo_original>
// kernel: word_visual_attention.1
$region0: #{word_visual_attention.1}
  #allocation0 [shape = 'u32[]', space=smem, size = 0x4, offset = 0x4, fixed_abs, tag = 'smem constant byte address 0x4 - core index']
  #allocation1 [shape = 'u32[72,128]{1,0:T(1,128)}', space=vmem, size = 0x9000, scoped, tag = 'internal scratch']
  #allocation2 [shape = 'f32[2,32,256]{2,1,0:T(8,128)}', space=vmem, size = 0x10000, scoped, tag = 'scratch operand']
  #allocation3 [shape = 'f32[32,1]{1,0:T(8,128)}', space=vmem, size = 0x4000, scoped, tag = 'scratch operand']
  #allocation4 [shape = 'f32[32,1]{1,0:T(8,128)}', space=vmem, size = 0x4000, scoped, tag = 'scratch operand']
  #allocation5 [shape = 'f32[32,1]{1,0:T(8,128)}', space=vmem, size = 0x4000, scoped, tag = 'scratch operand']
  #allocation6 [shape = 'f32[32,1]{1,0:T(8,128)}', space=vmem, size = 0x4000, scoped, tag = 'scratch operand']
  #allocation7 [shape = 'f32[1,1]{1,0:T(1,128)S(6)}', space=smem, size = 0x200, scoped, tag = 'scoped memory for word_visual_attention.1']
  %s0 = inlined_call_operand.vmem [shape: f32[2,8,32], index: 0, kind: input, shape index: {}]
  %s1 = inlined_call_operand.vmem [shape: f32[2,32,256], index: 1, kind: input, shape index: {}]
  %s2 = inlined_call_operand.vmem [shape: f32[32,64], index: 2, kind: input, shape index: {}]
  %s3 = inlined_call_operand.vmem [shape: f32[1,64], index: 3, kind: input, shape index: {}]
  %s4 = inlined_call_operand.vmem [shape: f32[64,32], index: 4, kind: input, shape index: {}]
  %s5 = inlined_call_operand.vmem [shape: f32[64,1], index: 5, kind: input, shape index: {}]
  %s6 = inlined_call_operand.vmem [shape: f32[32,32], index: 6, kind: input, shape index: {}]
  %s7 = inlined_call_operand.vmem [shape: f32[32,1], index: 7, kind: input, shape index: {}]
  %s8 = inlined_call_operand.vmem [shape: f32[32,32], index: 8, kind: input, shape index: {}]
  %s9 = inlined_call_operand.vmem [shape: f32[32,1], index: 9, kind: input, shape index: {}]
  %s10 = inlined_call_operand.vmem [shape: f32[32,1], index: 10, kind: input, shape index: {}]
  %s11 = inlined_call_operand.vmem [shape: f32[32,1], index: 11, kind: input, shape index: {}]
  %s12 = inlined_call_operand.vmem [shape: f32[32,1], index: 12, kind: input, shape index: {}]
  %s13 = inlined_call_operand.vmem [shape: f32[32,1], index: 13, kind: input, shape index: {}]
  %s14 = inlined_call_operand.vmem [shape: f32[32,1], index: 14, kind: input, shape index: {}]
  %s15 = inlined_call_operand.vmem [shape: f32[32,1], index: 15, kind: input, shape index: {}]
  %s16 = inlined_call_operand.<no memory space> [shape: f32[1,1], index: 16, kind: input, shape index: {}]
  %s17 = inlined_call_operand.vmem [shape: f32[2,32,256], index: 17, kind: output, shape index: {}]
  %s18 = sld [smem:[#allocation0]]
  $region117: #{word_visual_attention.1} parent=0
    _
  %s20 = ssub.s32 1, %s18
  %s21 = scalar_select 0, %s20, %s18
  %22 = sst [smem:[#allocation7]] %s16
  loop: start=0, step=1, limit=6
  $region2: #{word_visual_attention.1} parent=0 // loop_pre_header
    _
  $region3: #{word_visual_attention.1} parent=0 // loop_header
    %s24 = sphi 0, %s28
    %p25 = scmp.ge.s32.totalorder %s24, 6
    %s31 = sphi 0, %s43
    %s32 = sphi 0, %s39
    %s33 = sphi 0, %s31
    %s34 = sphi 0, %s32
    %s35 = sphi 0, %s33
    %s36 = sphi 0, %s34
    %s46 = sphi 0, %s48
    %s49 = sphi 0, %s46
    %s50 = sphi 0, %s49
    %s66 = sphi 0, %s50
    %s72 = sphi 0, %s74
    %s75 = sphi 0, %s72
    %s76 = sphi 0, %s75
    %s92 = sphi 0, %s76
    %s96 = sphi 0, %s96
    %s98 = sphi 0, %s96
    %s99 = sphi 0, %s98
    %s113 = sphi 0, %s99
    %s117 = sphi 0, %s117
    %s119 = sphi 0, %s117
    %s120 = sphi 0, %s119
    %s134 = sphi 0, %s120
    %s138 = sphi 0, %s138
    %s140 = sphi 0, %s138
    %s141 = sphi 0, %s140
    %s155 = sphi 0, %s141
    %s159 = sphi 0, %s159
    %s161 = sphi 0, %s159
    %s162 = sphi 0, %s161
    %s176 = sphi 0, %s162
    %s180 = sphi 0, %s180
    %s182 = sphi 0, %s180
    %s183 = sphi 0, %s182
    %s197 = sphi 0, %s183
    %s201 = sphi 0, %s201
    %s203 = sphi 0, %s201
    %s204 = sphi 0, %s203
    %s218 = sphi 0, %s204
    %s222 = sphi 0, %s222
    %s224 = sphi 0, %s222
    %s225 = sphi 0, %s224
    %s239 = sphi 0, %s225
    %s243 = sphi 0, %s243
    %s245 = sphi 0, %s243
    %s246 = sphi 0, %s245
    %s260 = sphi 0, %s246
    %s264 = sphi 0, %s264
    %s266 = sphi 0, %s264
    %s267 = sphi 0, %s266
    %s281 = sphi 0, %s267
    %s285 = sphi 0, %s285
    %s287 = sphi 0, %s285
    %s288 = sphi 0, %s287
    %s302 = sphi 0, %s288
    %s306 = sphi 0, %s306
    %s308 = sphi 0, %s306
    %s309 = sphi 0, %s308
    %s323 = sphi 0, %s309
    %s327 = sphi 0, %s327
    %s329 = sphi 0, %s327
    %s330 = sphi 0, %s329
    %s344 = sphi 0, %s330
    %s348 = sphi 0, %s348
    %s350 = sphi 0, %s348
    %s351 = sphi 0, %s350
    %s365 = sphi 0, %s351
    %s369 = sphi 0, %s369
    %s371 = sphi 0, %s369
    %s372 = sphi 0, %s371
    %s386 = sphi 0, %s372
    %s390 = sphi 0, %s390
    %s392 = sphi 0, %s390
    %s393 = sphi 0, %s392
    %s407 = sphi 0, %s393
    %s413 = sphi 0, %s415
    %s416 = sphi 0, %s413
    %s417 = sphi 0, %s416
    %s433 = sphi 0, %s417
  $region4: #{word_visual_attention.1} parent=0 // loop_header_branch
    %27 = sbr.rel (%p25) target = $region8
  $region5: #{word_visual_attention.1} parent=0 // loop_body
    %s29 = ssub.s32 %s24, 1
    %s30 = ssub.s32 %s24, 2
    %s37 = sadd.s32 1, %s32
    %p38 = scmp.ge.s32.totalorder %s37, 2
    %s39 = scalar_select %p38, 0, %s37
    %s40 = sadd.s32 1, %s31
    %s41 = scalar_select %p38, %s40, %s31
    %p42 = scmp.ge.s32.totalorder %s41, 2
    %s43 = scalar_select %p42, 0, %s41
    %s44 = ssub.s32 %s32, %s39
    %p45 = scmp.eq.s32.totalorder %s44, 0
    %s47 = sadd.s32 %s46, 1
    %s48 = scalar_select %p45, %s46, %s47
    %p51 = pneg %p45
    %p52 = scmp.eq.s32.totalorder %s24, 3
    %p53 = por %p51, %p52
    %p54 = scmp.ne.s32.totalorder %s46, %s49
    %p55 = scmp.eq.s32.totalorder %s24, 0
    %p56 = por %p54, %p55
    %p57 = scmp.ne.s32.totalorder %s46, %s49
    %p58 = scmp.eq.s32.totalorder %s29, 3
    %p59 = por %p57, %p58
    %p60 = scmp.ne.s32.totalorder %s49, %s50
    %p61 = scmp.eq.s32.totalorder %s29, 0
    %p62 = por %p60, %p61
    %p63 = scmp.ne.s32.totalorder %s49, %s50
    %p64 = scmp.eq.s32.totalorder %s30, 3
    %p65 = por %p63, %p64
    %p67 = scmp.ne.s32.totalorder %s50, %s66
    %p68 = scmp.eq.s32.totalorder %s30, 0
    %p69 = por %p67, %p68
    %s70 = ssub.s32 %s32, %s39
    %p71 = scmp.eq.s32.totalorder %s70, 0
    %s73 = sadd.s32 %s72, 1
    %s74 = scalar_select %p71, %s72, %s73
    %p77 = pneg %p71
    %p78 = scmp.eq.s32.totalorder %s24, 3
    %p79 = por %p77, %p78
    %p80 = scmp.ne.s32.totalorder %s72, %s75
    %p81 = scmp.eq.s32.totalorder %s24, 0
    %p82 = por %p80, %p81
    %p83 = scmp.ne.s32.totalorder %s72, %s75
    %p84 = scmp.eq.s32.totalorder %s29, 3
    %p85 = por %p83, %p84
    %p86 = scmp.ne.s32.totalorder %s75, %s76
    %p87 = scmp.eq.s32.totalorder %s29, 0
    %p88 = por %p86, %p87
    %p89 = scmp.ne.s32.totalorder %s75, %s76
    %p90 = scmp.eq.s32.totalorder %s30, 3
    %p91 = por %p89, %p90
    %p93 = scmp.ne.s32.totalorder %s76, %s92
    %p94 = scmp.eq.s32.totalorder %s30, 0
    %p95 = por %p93, %p94
    %s97 = sadd.s32 %s96, 1
    %p100 = scmp.eq.s32.totalorder %s24, 3
    %p101 = scmp.ne.s32.totalorder %s96, %s98
    %p102 = scmp.eq.s32.totalorder %s24, 0
    %p103 = por %p101, %p102
    %p104 = scmp.ne.s32.totalorder %s96, %s98
    %p105 = scmp.eq.s32.totalorder %s29, 3
    %p106 = por %p104, %p105
    %p107 = scmp.ne.s32.totalorder %s98, %s99
    %p108 = scmp.eq.s32.totalorder %s29, 0
    %p109 = por %p107, %p108
    %p110 = scmp.ne.s32.totalorder %s98, %s99
    %p111 = scmp.eq.s32.totalorder %s30, 3
    %p112 = por %p110, %p111
    %p114 = scmp.ne.s32.totalorder %s99, %s113
    %p115 = scmp.eq.s32.totalorder %s30, 0
    %p116 = por %p114, %p115
    %s118 = sadd.s32 %s117, 1
    %p121 = scmp.eq.s32.totalorder %s24, 3
    %p122 = scmp.ne.s32.totalorder %s117, %s119
    %p123 = scmp.eq.s32.totalorder %s24, 0
    %p124 = por %p122, %p123
    %p125 = scmp.ne.s32.totalorder %s117, %s119
    %p126 = scmp.eq.s32.totalorder %s29, 3
    %p127 = por %p125, %p126
    %p128 = scmp.ne.s32.totalorder %s119, %s120
    %p129 = scmp.eq.s32.totalorder %s29, 0
    %p130 = por %p128, %p129
    %p131 = scmp.ne.s32.totalorder %s119, %s120
    %p132 = scmp.eq.s32.totalorder %s30, 3
    %p133 = por %p131, %p132
    %p135 = scmp.ne.s32.totalorder %s120, %s134
    %p136 = scmp.eq.s32.totalorder %s30, 0
    %p137 = por %p135, %p136
    %s139 = sadd.s32 %s138, 1
    %p142 = scmp.eq.s32.totalorder %s24, 3
    %p143 = scmp.ne.s32.totalorder %s138, %s140
    %p144 = scmp.eq.s32.totalorder %s24, 0
    %p145 = por %p143, %p144
    %p146 = scmp.ne.s32.totalorder %s138, %s140
    %p147 = scmp.eq.s32.totalorder %s29, 3
    %p148 = por %p146, %p147
    %p149 = scmp.ne.s32.totalorder %s140, %s141
    %p150 = scmp.eq.s32.totalorder %s29, 0
    %p151 = por %p149, %p150
    %p152 = scmp.ne.s32.totalorder %s140, %s141
    %p153 = scmp.eq.s32.totalorder %s30, 3
    %p154 = por %p152, %p153
    %p156 = scmp.ne.s32.totalorder %s141, %s155
    %p157 = scmp.eq.s32.totalorder %s30, 0
    %p158 = por %p156, %p157
    %s160 = sadd.s32 %s159, 1
    %p163 = scmp.eq.s32.totalorder %s24, 3
    %p164 = scmp.ne.s32.totalorder %s159, %s161
    %p165 = scmp.eq.s32.totalorder %s24, 0
    %p166 = por %p164, %p165
    %p167 = scmp.ne.s32.totalorder %s159, %s161
    %p168 = scmp.eq.s32.totalorder %s29, 3
    %p169 = por %p167, %p168
    %p170 = scmp.ne.s32.totalorder %s161, %s162
    %p171 = scmp.eq.s32.totalorder %s29, 0
    %p172 = por %p170, %p171
    %p173 = scmp.ne.s32.totalorder %s161, %s162
    %p174 = scmp.eq.s32.totalorder %s30, 3
    %p175 = por %p173, %p174
    %p177 = scmp.ne.s32.totalorder %s162, %s176
    %p178 = scmp.eq.s32.totalorder %s30, 0
    %p179 = por %p177, %p178
    %s181 = sadd.s32 %s180, 1
    %p184 = scmp.eq.s32.totalorder %s24, 3
    %p185 = scmp.ne.s32.totalorder %s180, %s182
    %p186 = scmp.eq.s32.totalorder %s24, 0
    %p187 = por %p185, %p186
    %p188 = scmp.ne.s32.totalorder %s180, %s182
    %p189 = scmp.eq.s32.totalorder %s29, 3
    %p190 = por %p188, %p189
    %p191 = scmp.ne.s32.totalorder %s182, %s183
    %p192 = scmp.eq.s32.totalorder %s29, 0
    %p193 = por %p191, %p192
    %p194 = scmp.ne.s32.totalorder %s182, %s183
    %p195 = scmp.eq.s32.totalorder %s30, 3
    %p196 = por %p194, %p195
    %p198 = scmp.ne.s32.totalorder %s183, %s197
    %p199 = scmp.eq.s32.totalorder %s30, 0
    %p200 = por %p198, %p199
    %s202 = sadd.s32 %s201, 1
    %p205 = scmp.eq.s32.totalorder %s24, 3
    %p206 = scmp.ne.s32.totalorder %s201, %s203
    %p207 = scmp.eq.s32.totalorder %s24, 0
    %p208 = por %p206, %p207
    %p209 = scmp.ne.s32.totalorder %s201, %s203
    %p210 = scmp.eq.s32.totalorder %s29, 3
    %p211 = por %p209, %p210
    %p212 = scmp.ne.s32.totalorder %s203, %s204
    %p213 = scmp.eq.s32.totalorder %s29, 0
    %p214 = por %p212, %p213
    %p215 = scmp.ne.s32.totalorder %s203, %s204
    %p216 = scmp.eq.s32.totalorder %s30, 3
    %p217 = por %p215, %p216
    %p219 = scmp.ne.s32.totalorder %s204, %s218
    %p220 = scmp.eq.s32.totalorder %s30, 0
    %p221 = por %p219, %p220
    %s223 = sadd.s32 %s222, 1
    %p226 = scmp.eq.s32.totalorder %s24, 3
    %p227 = scmp.ne.s32.totalorder %s222, %s224
    %p228 = scmp.eq.s32.totalorder %s24, 0
    %p229 = por %p227, %p228
    %p230 = scmp.ne.s32.totalorder %s222, %s224
    %p231 = scmp.eq.s32.totalorder %s29, 3
    %p232 = por %p230, %p231
    %p233 = scmp.ne.s32.totalorder %s224, %s225
    %p234 = scmp.eq.s32.totalorder %s29, 0
    %p235 = por %p233, %p234
    %p236 = scmp.ne.s32.totalorder %s224, %s225
    %p237 = scmp.eq.s32.totalorder %s30, 3
    %p238 = por %p236, %p237
    %p240 = scmp.ne.s32.totalorder %s225, %s239
    %p241 = scmp.eq.s32.totalorder %s30, 0
    %p242 = por %p240, %p241
    %s244 = sadd.s32 %s243, 1
    %p247 = scmp.eq.s32.totalorder %s24, 3
    %p248 = scmp.ne.s32.totalorder %s243, %s245
    %p249 = scmp.eq.s32.totalorder %s24, 0
    %p250 = por %p248, %p249
    %p251 = scmp.ne.s32.totalorder %s243, %s245
    %p252 = scmp.eq.s32.totalorder %s29, 3
    %p253 = por %p251, %p252
    %p254 = scmp.ne.s32.totalorder %s245, %s246
    %p255 = scmp.eq.s32.totalorder %s29, 0
    %p256 = por %p254, %p255
    %p257 = scmp.ne.s32.totalorder %s245, %s246
    %p258 = scmp.eq.s32.totalorder %s30, 3
    %p259 = por %p257, %p258
    %p261 = scmp.ne.s32.totalorder %s246, %s260
    %p262 = scmp.eq.s32.totalorder %s30, 0
    %p263 = por %p261, %p262
    %s265 = sadd.s32 %s264, 1
    %p268 = scmp.eq.s32.totalorder %s24, 3
    %p269 = scmp.ne.s32.totalorder %s264, %s266
    %p270 = scmp.eq.s32.totalorder %s24, 0
    %p271 = por %p269, %p270
    %p272 = scmp.ne.s32.totalorder %s264, %s266
    %p273 = scmp.eq.s32.totalorder %s29, 3
    %p274 = por %p272, %p273
    %p275 = scmp.ne.s32.totalorder %s266, %s267
    %p276 = scmp.eq.s32.totalorder %s29, 0
    %p277 = por %p275, %p276
    %p278 = scmp.ne.s32.totalorder %s266, %s267
    %p279 = scmp.eq.s32.totalorder %s30, 3
    %p280 = por %p278, %p279
    %p282 = scmp.ne.s32.totalorder %s267, %s281
    %p283 = scmp.eq.s32.totalorder %s30, 0
    %p284 = por %p282, %p283
    %s286 = sadd.s32 %s285, 1
    %p289 = scmp.eq.s32.totalorder %s24, 3
    %p290 = scmp.ne.s32.totalorder %s285, %s287
    %p291 = scmp.eq.s32.totalorder %s24, 0
    %p292 = por %p290, %p291
    %p293 = scmp.ne.s32.totalorder %s285, %s287
    %p294 = scmp.eq.s32.totalorder %s29, 3
    %p295 = por %p293, %p294
    %p296 = scmp.ne.s32.totalorder %s287, %s288
    %p297 = scmp.eq.s32.totalorder %s29, 0
    %p298 = por %p296, %p297
    %p299 = scmp.ne.s32.totalorder %s287, %s288
    %p300 = scmp.eq.s32.totalorder %s30, 3
    %p301 = por %p299, %p300
    %p303 = scmp.ne.s32.totalorder %s288, %s302
    %p304 = scmp.eq.s32.totalorder %s30, 0
    %p305 = por %p303, %p304
    %s307 = sadd.s32 %s306, 1
    %p310 = scmp.eq.s32.totalorder %s24, 3
    %p311 = scmp.ne.s32.totalorder %s306, %s308
    %p312 = scmp.eq.s32.totalorder %s24, 0
    %p313 = por %p311, %p312
    %p314 = scmp.ne.s32.totalorder %s306, %s308
    %p315 = scmp.eq.s32.totalorder %s29, 3
    %p316 = por %p314, %p315
    %p317 = scmp.ne.s32.totalorder %s308, %s309
    %p318 = scmp.eq.s32.totalorder %s29, 0
    %p319 = por %p317, %p318
    %p320 = scmp.ne.s32.totalorder %s308, %s309
    %p321 = scmp.eq.s32.totalorder %s30, 3
    %p322 = por %p320, %p321
    %p324 = scmp.ne.s32.totalorder %s309, %s323
    %p325 = scmp.eq.s32.totalorder %s30, 0
    %p326 = por %p324, %p325
    %s328 = sadd.s32 %s327, 1
    %p331 = scmp.eq.s32.totalorder %s24, 3
    %p332 = scmp.ne.s32.totalorder %s327, %s329
    %p333 = scmp.eq.s32.totalorder %s24, 0
    %p334 = por %p332, %p333
    %p335 = scmp.ne.s32.totalorder %s327, %s329
    %p336 = scmp.eq.s32.totalorder %s29, 3
    %p337 = por %p335, %p336
    %p338 = scmp.ne.s32.totalorder %s329, %s330
    %p339 = scmp.eq.s32.totalorder %s29, 0
    %p340 = por %p338, %p339
    %p341 = scmp.ne.s32.totalorder %s329, %s330
    %p342 = scmp.eq.s32.totalorder %s30, 3
    %p343 = por %p341, %p342
    %p345 = scmp.ne.s32.totalorder %s330, %s344
    %p346 = scmp.eq.s32.totalorder %s30, 0
    %p347 = por %p345, %p346
    %s349 = sadd.s32 %s348, 1
    %p352 = scmp.eq.s32.totalorder %s24, 3
    %p353 = scmp.ne.s32.totalorder %s348, %s350
    %p354 = scmp.eq.s32.totalorder %s24, 0
    %p355 = por %p353, %p354
    %p356 = scmp.ne.s32.totalorder %s348, %s350
    %p357 = scmp.eq.s32.totalorder %s29, 3
    %p358 = por %p356, %p357
    %p359 = scmp.ne.s32.totalorder %s350, %s351
    %p360 = scmp.eq.s32.totalorder %s29, 0
    %p361 = por %p359, %p360
    %p362 = scmp.ne.s32.totalorder %s350, %s351
    %p363 = scmp.eq.s32.totalorder %s30, 3
    %p364 = por %p362, %p363
    %p366 = scmp.ne.s32.totalorder %s351, %s365
    %p367 = scmp.eq.s32.totalorder %s30, 0
    %p368 = por %p366, %p367
    %s370 = sadd.s32 %s369, 1
    %p373 = scmp.eq.s32.totalorder %s24, 3
    %p374 = scmp.ne.s32.totalorder %s369, %s371
    %p375 = scmp.eq.s32.totalorder %s24, 0
    %p376 = por %p374, %p375
    %p377 = scmp.ne.s32.totalorder %s369, %s371
    %p378 = scmp.eq.s32.totalorder %s29, 3
    %p379 = por %p377, %p378
    %p380 = scmp.ne.s32.totalorder %s371, %s372
    %p381 = scmp.eq.s32.totalorder %s29, 0
    %p382 = por %p380, %p381
    %p383 = scmp.ne.s32.totalorder %s371, %s372
    %p384 = scmp.eq.s32.totalorder %s30, 3
    %p385 = por %p383, %p384
    %p387 = scmp.ne.s32.totalorder %s372, %s386
    %p388 = scmp.eq.s32.totalorder %s30, 0
    %p389 = por %p387, %p388
    %s391 = sadd.s32 %s390, 1
    %p394 = scmp.eq.s32.totalorder %s24, 3
    %p395 = scmp.ne.s32.totalorder %s390, %s392
    %p396 = scmp.eq.s32.totalorder %s24, 0
    %p397 = por %p395, %p396
    %p398 = scmp.ne.s32.totalorder %s390, %s392
    %p399 = scmp.eq.s32.totalorder %s29, 3
    %p400 = por %p398, %p399
    %p401 = scmp.ne.s32.totalorder %s392, %s393
    %p402 = scmp.eq.s32.totalorder %s29, 0
    %p403 = por %p401, %p402
    %p404 = scmp.ne.s32.totalorder %s392, %s393
    %p405 = scmp.eq.s32.totalorder %s30, 3
    %p406 = por %p404, %p405
    %p408 = scmp.ne.s32.totalorder %s393, %s407
    %p409 = scmp.eq.s32.totalorder %s30, 0
    %p410 = por %p408, %p409
    %s411 = ssub.s32 %s32, %s39
    %p412 = scmp.eq.s32.totalorder %s411, 0
    %s414 = sadd.s32 %s413, 1
    %s415 = scalar_select %p412, %s413, %s414
    %p418 = pneg %p412
    %p419 = scmp.eq.s32.totalorder %s24, 3
    %p420 = por %p418, %p419
    %p421 = scmp.ne.s32.totalorder %s413, %s416
    %p422 = scmp.eq.s32.totalorder %s24, 0
    %p423 = por %p421, %p422
    %p424 = scmp.ne.s32.totalorder %s413, %s416
    %p425 = scmp.eq.s32.totalorder %s29, 3
    %p426 = por %p424, %p425
    %p427 = scmp.ne.s32.totalorder %s416, %s417
    %p428 = scmp.eq.s32.totalorder %s29, 0
    %p429 = por %p427, %p428
    %p430 = scmp.ne.s32.totalorder %s416, %s417
    %p431 = scmp.eq.s32.totalorder %s30, 3
    %p432 = por %p430, %p431
    %p434 = scmp.ne.s32.totalorder %s417, %s433
    %p435 = scmp.eq.s32.totalorder %s30, 0
    %p436 = por %p434, %p435
    %p437 = scmp.le.s32.totalorder 1, %s24
    %p438 = scmp.lt.s32.totalorder %s24, 5
    %p439 = pnand %p437, %p438
    %p440 = pneg %p439
    // Predicated region
    $region9: #{word_visual_attention.1} parent=5 // pred_check
      _
    $region10: #{word_visual_attention.1} parent=5 // pred_check_branch
      %442 = sbr.rel (%p439) target = $region12
    $region11: #{word_visual_attention.1} parent=5 // pred_region
      %s443 = ssub.s32 %s24, 1
      // Predicated region
      $region13: #{word_visual_attention.1} parent=11 // pred_check
        %p444 = pneg %p109
      $region14: #{word_visual_attention.1} parent=11 // pred_check_branch
        %446 = sbr.rel (%p444) target = $region16
      $region15: #{word_visual_attention.1} parent=11 // pred_region
        _
      $region16: #{word_visual_attention.1} parent=11 // pred_fallthru
        _
      // Predicated region
      $region17: #{word_visual_attention.1} parent=11 // pred_check
        %p447 = pneg %p130
      $region18: #{word_visual_attention.1} parent=11 // pred_check_branch
        %449 = sbr.rel (%p447) target = $region20
      $region19: #{word_visual_attention.1} parent=11 // pred_region
        _
      $region20: #{word_visual_attention.1} parent=11 // pred_fallthru
        _
      // Predicated region
      $region21: #{word_visual_attention.1} parent=11 // pred_check
        %p450 = pneg %p151
      $region22: #{word_visual_attention.1} parent=11 // pred_check_branch
        %452 = sbr.rel (%p450) target = $region24
      $region23: #{word_visual_attention.1} parent=11 // pred_region
        _
      $region24: #{word_visual_attention.1} parent=11 // pred_fallthru
        _
      // Predicated region
      $region25: #{word_visual_attention.1} parent=11 // pred_check
        %p453 = pneg %p172
      $region26: #{word_visual_attention.1} parent=11 // pred_check_branch
        %455 = sbr.rel (%p453) target = $region28
      $region27: #{word_visual_attention.1} parent=11 // pred_region
        _
      $region28: #{word_visual_attention.1} parent=11 // pred_fallthru
        _
      // Predicated region
      $region29: #{word_visual_attention.1} parent=11 // pred_check
        %p456 = pneg %p193
      $region30: #{word_visual_attention.1} parent=11 // pred_check_branch
        %458 = sbr.rel (%p456) target = $region32
      $region31: #{word_visual_attention.1} parent=11 // pred_region
        _
      $region32: #{word_visual_attention.1} parent=11 // pred_fallthru
        _
      // Predicated region
      $region33: #{word_visual_attention.1} parent=11 // pred_check
        %p459 = pneg %p214
      $region34: #{word_visual_attention.1} parent=11 // pred_check_branch
        %461 = sbr.rel (%p459) target = $region36
      $region35: #{word_visual_attention.1} parent=11 // pred_region
        _
      $region36: #{word_visual_attention.1} parent=11 // pred_fallthru
        _
      // Predicated region
      $region37: #{word_visual_attention.1} parent=11 // pred_check
        %p462 = pneg %p235
      $region38: #{word_visual_attention.1} parent=11 // pred_check_branch
        %464 = sbr.rel (%p462) target = $region40
      $region39: #{word_visual_attention.1} parent=11 // pred_region
        _
      $region40: #{word_visual_attention.1} parent=11 // pred_fallthru
        _
      // Predicated region
      $region41: #{word_visual_attention.1} parent=11 // pred_check
        %p465 = pneg %p256
      $region42: #{word_visual_attention.1} parent=11 // pred_check_branch
        %467 = sbr.rel (%p465) target = $region44
      $region43: #{word_visual_attention.1} parent=11 // pred_region
        _
      $region44: #{word_visual_attention.1} parent=11 // pred_fallthru
        _
      // Predicated region
      $region45: #{word_visual_attention.1} parent=11 // pred_check
        %p468 = pneg %p277
      $region46: #{word_visual_attention.1} parent=11 // pred_check_branch
        %470 = sbr.rel (%p468) target = $region48
      $region47: #{word_visual_attention.1} parent=11 // pred_region
        _
      $region48: #{word_visual_attention.1} parent=11 // pred_fallthru
        _
      // Predicated region
      $region49: #{word_visual_attention.1} parent=11 // pred_check
        %p471 = pneg %p298
      $region50: #{word_visual_attention.1} parent=11 // pred_check_branch
        %473 = sbr.rel (%p471) target = $region52
      $region51: #{word_visual_attention.1} parent=11 // pred_region
        _
      $region52: #{word_visual_attention.1} parent=11 // pred_fallthru
        _
      // Predicated region
      $region53: #{word_visual_attention.1} parent=11 // pred_check
        %p474 = pneg %p319
      $region54: #{word_visual_attention.1} parent=11 // pred_check_branch
        %476 = sbr.rel (%p474) target = $region56
      $region55: #{word_visual_attention.1} parent=11 // pred_region
        _
      $region56: #{word_visual_attention.1} parent=11 // pred_fallthru
        _
      // Predicated region
      $region57: #{word_visual_attention.1} parent=11 // pred_check
        %p477 = pneg %p340
      $region58: #{word_visual_attention.1} parent=11 // pred_check_branch
        %479 = sbr.rel (%p477) target = $region60
      $region59: #{word_visual_attention.1} parent=11 // pred_region
        _
      $region60: #{word_visual_attention.1} parent=11 // pred_fallthru
        _
      // Predicated region
      $region61: #{word_visual_attention.1} parent=11 // pred_check
        %p480 = pneg %p361
      $region62: #{word_visual_attention.1} parent=11 // pred_check_branch
        %482 = sbr.rel (%p480) target = $region64
      $region63: #{word_visual_attention.1} parent=11 // pred_region
        _
      $region64: #{word_visual_attention.1} parent=11 // pred_fallthru
        _
      // Predicated region
      $region65: #{word_visual_attention.1} parent=11 // pred_check
        %p483 = pneg %p382
      $region66: #{word_visual_attention.1} parent=11 // pred_check_branch
        %485 = sbr.rel (%p483) target = $region68
      $region67: #{word_visual_attention.1} parent=11 // pred_region
        _
      $region68: #{word_visual_attention.1} parent=11 // pred_fallthru
        _
      // Predicated region
      $region69: #{word_visual_attention.1} parent=11 // pred_check
        %p486 = pneg %p403
      $region70: #{word_visual_attention.1} parent=11 // pred_check_branch
        %488 = sbr.rel (%p486) target = $region72
      $region71: #{word_visual_attention.1} parent=11 // pred_region
        _
      $region72: #{word_visual_attention.1} parent=11 // pred_fallthru
        _
    $region12: #{word_visual_attention.1} parent=5 // pred_fallthru
      _
    %p489 = scmp.lt.s32.totalorder %s24, 4
    // Predicated region
    $region73: #{word_visual_attention.1} parent=5 // pred_check
      %p490 = pneg %p489
    $region74: #{word_visual_attention.1} parent=5 // pred_check_branch
      %492 = sbr.rel (%p490) target = $region76
    $region75: #{word_visual_attention.1} parent=5 // pred_region
      // Predicated region
      $region77: #{word_visual_attention.1} parent=75 // pred_check
        %p493 = pneg %p56
      $region78: #{word_visual_attention.1} parent=75 // pred_check_branch
        %495 = sbr.rel (%p493) target = $region80
      $region79: #{word_visual_attention.1} parent=75 // pred_region
        %p496 = scmp.lt.s32.totalorder %s32, 1
        %s497 = scalar_select %p496, %s32, 1
        %s498 = smul.addr %s497, 8
        %s499 = scalar_lea.vmem %s0, %s498
      $region80: #{word_visual_attention.1} parent=75 // pred_fallthru
        _
      // Predicated region
      $region81: #{word_visual_attention.1} parent=75 // pred_check
        %p500 = pneg %p82
      $region82: #{word_visual_attention.1} parent=75 // pred_check_branch
        %502 = sbr.rel (%p500) target = $region84
      $region83: #{word_visual_attention.1} parent=75 // pred_region
        %p503 = scmp.lt.s32.totalorder %s32, 1
        %s504 = scalar_select %p503, %s32, 1
        %s505 = smul.addr %s504, 8
        %s506 = smul.addr %s505, 8
        %s507 = scalar_lea.vmem %s1, %s506
      $region84: #{word_visual_attention.1} parent=75 // pred_fallthru
        _
    $region76: #{word_visual_attention.1} parent=5 // pred_fallthru
      _
    %p508 = scmp.le.s32.totalorder 1, %s24
    %p509 = scmp.lt.s32.totalorder %s24, 5
    %p510 = pnand %p508, %p509
    %p511 = pneg %p510
    // Predicated region
    $region85: #{word_visual_attention.1} parent=5 // pred_check
      _
    $region86: #{word_visual_attention.1} parent=5 // pred_check_branch
      %513 = sbr.rel (%p510) target = $region88
    $region87: #{word_visual_attention.1} parent=5 // pred_region
      %s514 = ssub.s32 %s24, 1
      %p515 = scmp.lt.s32.totalorder %s34, 1
      %s516 = scalar_select %p515, %s34, 1
      %s517 = smul.addr %s516, 8
      %s518 = scalar_lea.vmem %s0, %s517
      %p519 = pneg %p62
      %p520 = pneg %p59
      %p521 = scmp.lt.s32.totalorder %s34, 1
      %s522 = scalar_select %p521, %s34, 1
      %s523 = smul.addr %s522, 8
      %s524 = smul.addr %s523, 8
      %s525 = scalar_lea.vmem %s1, %s524
      %p526 = pneg %p88
      %p527 = pneg %p85
      %p528 = pneg %p109
      %p529 = pneg %p106
      %p530 = pneg %p130
      %p531 = pneg %p127
      %p532 = pneg %p151
      %p533 = pneg %p148
      %p534 = pneg %p172
      %p535 = pneg %p169
      %p536 = pneg %p193
      %p537 = pneg %p190
      %p538 = pneg %p214
      %p539 = pneg %p211
      %p540 = pneg %p235
      %p541 = pneg %p232
      %p542 = pneg %p256
      %p543 = pneg %p253
      %p544 = pneg %p277
      %p545 = pneg %p274
      %p546 = pneg %p298
      %p547 = pneg %p295
      %p548 = pneg %p319
      %p549 = pneg %p316
      %p550 = pneg %p340
      %p551 = pneg %p337
      %p552 = pneg %p361
      %p553 = pneg %p358
      %p554 = pneg %p382
      %p555 = pneg %p379
      %p556 = pneg %p403
      %p557 = pneg %p400
      %p558 = pneg %p429
      %p559 = pneg %p426
      %p560 = scmp.lt.s32.totalorder %s34, 1
      %s561 = scalar_select %p560, %s34, 1
      %s562 = smul.addr %s561, 8
      %s563 = smul.addr %s562, 8
      %s564 = scalar_lea.vmem %s17, %s563
      %p565 = scmp.lt.s32.totalorder %s34, 1
      %s566 = scalar_select %p565, %s34, 1
      %s567 = smul.addr %s566, 8
      %s568 = scalar_lea.vmem %s0, %s567
      %p569 = scmp.lt.s32.totalorder %s34, 1
      %s570 = scalar_select %p569, %s34, 1
      %s571 = smul.addr %s570, 8
      %s572 = smul.addr %s571, 8
      %s573 = scalar_lea.vmem %s1, %s572
      %p574 = scmp.lt.s32.totalorder %s34, 1
      %s575 = scalar_select %p574, %s34, 1
      %s576 = smul.addr %s575, 8
      %s577 = smul.addr %s576, 8
      %s578 = scalar_lea.vmem %s17, %s577
      %p579 = scmp.eq.s32.totalorder %s33, 0
      // Predicated region
      $region89: #{word_visual_attention.1} parent=87 // pred_check
        %p580 = pneg %p579
      $region90: #{word_visual_attention.1} parent=87 // pred_check_branch
        %582 = sbr.rel (%p580) target = $region92
      $region91: #{word_visual_attention.1} parent=87 // pred_region
        %p583 = scmp.eq.s32.totalorder %s34, 0
        // Predicated region
        $region93: #{word_visual_attention.1} parent=91 // pred_check
          %p584 = pneg %p583
        $region94: #{word_visual_attention.1} parent=91 // pred_check_branch
          %586 = sbr.rel (%p584) target = $region96
        $region95: #{word_visual_attention.1} parent=91 // pred_region
          %vm587 = vcmask 7168
          %588 = vst.msk [vmem:[#allocation3] sm:$0xff] %vm587, 0.0
          %589 = vst.msk [vmem:[#allocation3 + $0x8] sm:$0xff] %vm587, 0.0
          %590 = vst.msk [vmem:[#allocation3 + $0x10] sm:$0xff] %vm587, 0.0
          %591 = vst.msk [vmem:[#allocation3 + $0x18] sm:$0xff] %vm587, 0.0
          %592 = vst.msk [vmem:[#allocation4] sm:$0xff] %vm587, 0.0
          %593 = vst.msk [vmem:[#allocation4 + $0x8] sm:$0xff] %vm587, 0.0
          %594 = vst.msk [vmem:[#allocation4 + $0x10] sm:$0xff] %vm587, 0.0
          %595 = vst.msk [vmem:[#allocation4 + $0x18] sm:$0xff] %vm587, 0.0
        $region96: #{word_visual_attention.1} parent=91 // pred_fallthru
          _
        %v596 = vld [vmem:[%s568] sm:$0xff]
        %v597 = vld [vmem:[%s573] sm:$0xff]
        %v598 = vld [vmem:[%s573 + $0x8] sm:$0xff]
        %v599 = vld [vmem:[%s573 + $0x10] sm:$0xff]
        %v600 = vld [vmem:[%s573 + $0x18] sm:$0xff]
        %v601 = vld [vmem:[%s573 + $0x20] sm:$0xff]
        %v602 = vld [vmem:[%s573 + $0x28] sm:$0xff]
        %v603 = vld [vmem:[%s573 + $0x30] sm:$0xff]
        %v604 = vld [vmem:[%s573 + $0x38] sm:$0xff]
        %v605 = vld [vmem:[%s2] sm:$0xff]
        %v606 = vld [vmem:[%s2 + $0x8] sm:$0xff]
        %v607 = vld [vmem:[%s2 + $0x10] sm:$0xff]
        %v608 = vld [vmem:[%s2 + $0x18] sm:$0xff]
        %v609 = vld [vmem:[%s3] sm:$0x1]
        %v611 = vperm.slane %v609, 0
        %vm613 = vcmask 261120
        %v615 = vsel %vm613, %v596, 0
        %617 = vmatpush.msra.mxu0 0.0
        %618 = vmatpush.msra.mxu0 0.0
        %619 = vmatpush.msra.mxu0 0.0
        %620 = vmatpush.msra.mxu0 0.0
        %621 = vmatpush.msra.mxu0 0.0
        %622 = vmatpush.msra.mxu0 0.0
        %623 = vmatpush.msra.mxu0 0.0
        %624 = vmatpush.msra.mxu0 0.0
        %625 = vmatpush.msra.mxu0 0.0
        %626 = vmatpush.msra.mxu0 0.0
        %627 = vmatpush.msra.mxu0 0.0
        %628 = vmatpush.msra.mxu0 0.0
        %629 = vmatpush.msra.mxu0 %v608
        %630 = vmatpush.msra.mxu0 %v607
        %631 = vmatpush.msra.mxu0 %v606
        %632 = vmatpush.msra.mxu0 %v605
        %633 = vmatmul.f32.gmra.mxu0 %v615
        %v634 = vpop.f32.mrf.mxu0
        %v635 = vadd.f32 %v611, %v634
        %636 = vdwg.mxu0
        %v637 = vld [vmem:[%s4] sm:$0xff]
        %v638 = vld [vmem:[%s4 + $0x8] sm:$0xff]
        %v639 = vld [vmem:[%s4 + $0x10] sm:$0xff]
        %v640 = vld [vmem:[%s4 + $0x18] sm:$0xff]
        %v641 = vld [vmem:[%s4 + $0x20] sm:$0xff]
        %v642 = vld [vmem:[%s4 + $0x28] sm:$0xff]
        %v643 = vld [vmem:[%s4 + $0x30] sm:$0xff]
        %v644 = vld [vmem:[%s4 + $0x38] sm:$0xff]
        %v645 = vld [vmem:[%s5] sm:$0xff]
        %v646 = vld [vmem:[%s5 + $0x8] sm:$0xff]
        %v647 = vld [vmem:[%s5 + $0x10] sm:$0xff]
        %v648 = vld [vmem:[%s5 + $0x18] sm:$0xff]
        %v649 = vld [vmem:[%s5 + $0x20] sm:$0xff]
        %v650 = vld [vmem:[%s5 + $0x28] sm:$0xff]
        %v651 = vld [vmem:[%s5 + $0x30] sm:$0xff]
        %v652 = vld [vmem:[%s5 + $0x38] sm:$0xff]
        %654 = vset.pattern.permute.xlu0 0
        %655 = vperm.xlu0 %654, %v645
        %v656 = vpop.permute.xlu0 %655
        %659 = vset.pattern.permute.xlu0 0
        %660 = vperm.xlu0 %659, %v646
        %v661 = vpop.permute.xlu0 %660
        %664 = vset.pattern.permute.xlu0 0
        %665 = vperm.xlu0 %664, %v647
        %v666 = vpop.permute.xlu0 %665
        %669 = vset.pattern.permute.xlu0 0
        %670 = vperm.xlu0 %669, %v648
        %v671 = vpop.permute.xlu0 %670
        %674 = vset.pattern.permute.xlu0 0
        %675 = vperm.xlu0 %674, %v649
        %v676 = vpop.permute.xlu0 %675
        %679 = vset.pattern.permute.xlu0 0
        %680 = vperm.xlu0 %679, %v650
        %v681 = vpop.permute.xlu0 %680
        %684 = vset.pattern.permute.xlu0 0
        %685 = vperm.xlu0 %684, %v651
        %v686 = vpop.permute.xlu0 %685
        %689 = vset.pattern.permute.xlu0 0
        %690 = vperm.xlu0 %689, %v652
        %v691 = vpop.permute.xlu0 %690
        %v694 = vsel %vm613, %v637, 0
        %v697 = vsel %vm613, %v638, 0
        %v700 = vsel %vm613, %v639, 0
        %v703 = vsel %vm613, %v640, 0
        %v706 = vsel %vm613, %v641, 0
        %v709 = vsel %vm613, %v642, 0
        %v712 = vsel %vm613, %v643, 0
        %v715 = vsel %vm613, %v644, 0
        %717 = vmatpush.msra.mxu0 0.0
        %718 = vmatpush.msra.mxu0 0.0
        %719 = vmatpush.msra.mxu0 0.0
        %720 = vmatpush.msra.mxu0 0.0
        %721 = vmatpush.msra.mxu0 0.0
        %722 = vmatpush.msra.mxu0 0.0
        %723 = vmatpush.msra.mxu0 0.0
        %724 = vmatpush.msra.mxu0 0.0
        %725 = vmatpush.msra.mxu0 0.0
        %726 = vmatpush.msra.mxu0 0.0
        %727 = vmatpush.msra.mxu0 0.0
        %728 = vmatpush.msra.mxu0 0.0
        %729 = vmatpush.msra.mxu0 %v603
        %730 = vmatpush.msra.mxu0 %v601
        %731 = vmatpush.msra.mxu0 %v599
        %732 = vmatpush.msra.mxu0 %v597
        %733 = vmatmul.f32.gmra.mxu0 %v694
        %v734 = vpop.f32.mrf.mxu0
        %v735 = vadd.f32 %v656, %v734
        %736 = vmatmul.f32.gmra.mxu0 %v697
        %v737 = vpop.f32.mrf.mxu0
        %v738 = vadd.f32 %v661, %v737
        %739 = vmatmul.f32.gmra.mxu0 %v700
        %v740 = vpop.f32.mrf.mxu0
        %v741 = vadd.f32 %v666, %v740
        %742 = vmatmul.f32.gmra.mxu0 %v703
        %v743 = vpop.f32.mrf.mxu0
        %v744 = vadd.f32 %v671, %v743
        %745 = vmatmul.f32.gmra.mxu0 %v706
        %v746 = vpop.f32.mrf.mxu0
        %v747 = vadd.f32 %v676, %v746
        %748 = vmatmul.f32.gmra.mxu0 %v709
        %v749 = vpop.f32.mrf.mxu0
        %v750 = vadd.f32 %v681, %v749
        %751 = vmatmul.f32.gmra.mxu0 %v712
        %v752 = vpop.f32.mrf.mxu0
        %v753 = vadd.f32 %v686, %v752
        %754 = vmatmul.f32.gmra.mxu0 %v715
        %v755 = vpop.f32.mrf.mxu0
        %v756 = vadd.f32 %v691, %v755
        %757 = vdwg.mxu0
        %758 = vmatpush.msra.mxu0 0.0
        %759 = vmatpush.msra.mxu0 0.0
        %760 = vmatpush.msra.mxu0 0.0
        %761 = vmatpush.msra.mxu0 0.0
        %762 = vmatpush.msra.mxu0 0.0
        %763 = vmatpush.msra.mxu0 0.0
        %764 = vmatpush.msra.mxu0 0.0
        %765 = vmatpush.msra.mxu0 0.0
        %766 = vmatpush.msra.mxu0 0.0
        %767 = vmatpush.msra.mxu0 0.0
        %768 = vmatpush.msra.mxu0 0.0
        %769 = vmatpush.msra.mxu0 0.0
        %770 = vmatpush.msra.mxu0 %v604
        %771 = vmatpush.msra.mxu0 %v602
        %772 = vmatpush.msra.mxu0 %v600
        %773 = vmatpush.msra.mxu0 %v598
        %774 = vmatmul.f32.gmra.mxu0 %v694
        %v775 = vpop.f32.mrf.mxu0
        %v776 = vadd.f32 %v656, %v775
        %777 = vmatmul.f32.gmra.mxu0 %v697
        %v778 = vpop.f32.mrf.mxu0
        %v779 = vadd.f32 %v661, %v778
        %780 = vmatmul.f32.gmra.mxu0 %v700
        %v781 = vpop.f32.mrf.mxu0
        %v782 = vadd.f32 %v666, %v781
        %783 = vmatmul.f32.gmra.mxu0 %v703
        %v784 = vpop.f32.mrf.mxu0
        %v785 = vadd.f32 %v671, %v784
        %786 = vmatmul.f32.gmra.mxu0 %v706
        %v787 = vpop.f32.mrf.mxu0
        %v788 = vadd.f32 %v676, %v787
        %789 = vmatmul.f32.gmra.mxu0 %v709
        %v790 = vpop.f32.mrf.mxu0
        %v791 = vadd.f32 %v681, %v790
        %792 = vmatmul.f32.gmra.mxu0 %v712
        %v793 = vpop.f32.mrf.mxu0
        %v794 = vadd.f32 %v686, %v793
        %795 = vmatmul.f32.gmra.mxu0 %v715
        %v796 = vpop.f32.mrf.mxu0
        %v797 = vadd.f32 %v691, %v796
        %798 = vdwg.mxu0
        %v799 = vld [vmem:[%s10] sm:$0xff]
        %v800 = vld [vmem:[%s10 + $0x8] sm:$0xff]
        %v801 = vld [vmem:[%s10 + $0x10] sm:$0xff]
        %v802 = vld [vmem:[%s10 + $0x18] sm:$0xff]
        %v803 = vld [vmem:[%s11] sm:$0xff]
        %v804 = vld [vmem:[%s11 + $0x8] sm:$0xff]
        %v805 = vld [vmem:[%s11 + $0x10] sm:$0xff]
        %v806 = vld [vmem:[%s11 + $0x18] sm:$0xff]
        %v807 = vadd.f32 %v735, %v776
        %808 = vadd.xlane.f32.xlu0 %v807
        %v809 = vpop.xlane.xlu0 %808
        %v810 = vadd.f32 %v738, %v779
        %811 = vadd.xlane.f32.xlu0 %v810
        %v812 = vpop.xlane.xlu0 %811
        %v813 = vadd.f32 %v741, %v782
        %814 = vadd.xlane.f32.xlu0 %v813
        %v815 = vpop.xlane.xlu0 %814
        %v816 = vadd.f32 %v744, %v785
        %817 = vadd.xlane.f32.xlu0 %v816
        %v818 = vpop.xlane.xlu0 %817
        %v819 = vrcp.pop 256.0
        %v820 = vmul.f32 256.0, %v819
        %v821 = vsub.f32 1.0, %v820
        %v822 = vmul.f32 %v819, %v821
        %v823 = vadd.f32 %v819, %v822
        %vm824 = vweird.f32 %v819
        %v825 = vsel %vm824, %v819, %v823
        %v826 = vmul.f32 %v809, %v825
        %v827 = vmul.f32 %v812, %v825
        %v828 = vmul.f32 %v815, %v825
        %v829 = vmul.f32 %v818, %v825
        %v830 = vsub.f32 %v735, %v826
        %v831 = vsub.f32 %v776, %v826
        %v832 = vsub.f32 %v738, %v827
        %v833 = vsub.f32 %v779, %v827
        %v834 = vsub.f32 %v741, %v828
        %v835 = vsub.f32 %v782, %v828
        %v836 = vsub.f32 %v744, %v829
        %v837 = vsub.f32 %v785, %v829
        %v838 = vmul.f32 %v830, %v830
        %v839 = vmul.f32 %v831, %v831
        %v840 = vmul.f32 %v832, %v832
        %v841 = vmul.f32 %v833, %v833
        %v842 = vmul.f32 %v834, %v834
        %v843 = vmul.f32 %v835, %v835
        %v844 = vmul.f32 %v836, %v836
        %v845 = vmul.f32 %v837, %v837
        %v846 = vadd.f32 %v838, %v839
        %847 = vadd.xlane.f32.xlu0 %v846
        %v848 = vpop.xlane.xlu0 %847
        %v849 = vadd.f32 %v840, %v841
        %850 = vadd.xlane.f32.xlu0 %v849
        %v851 = vpop.xlane.xlu0 %850
        %v852 = vadd.f32 %v842, %v843
        %853 = vadd.xlane.f32.xlu0 %v852
        %v854 = vpop.xlane.xlu0 %853
        %v855 = vadd.f32 %v844, %v845
        %856 = vadd.xlane.f32.xlu0 %v855
        %v857 = vpop.xlane.xlu0 %856
        %v858 = vmul.f32 %v848, %v825
        %v859 = vmul.f32 %v851, %v825
        %v860 = vmul.f32 %v854, %v825
        %v861 = vmul.f32 %v857, %v825
        %v862 = vadd.f32 %v858, 1e-05
        %v863 = vadd.f32 %v859, 1e-05
        %v864 = vadd.f32 %v860, 1e-05
        %v865 = vadd.f32 %v861, 1e-05
        %v866 = vrsqrt.pop %v862
        %v867 = vmul.f32 %v866, %v862
        %v868 = vmul.f32 %v867, %v866
        %v869 = vmul.f32 0.5, %v868
        %v870 = vsub.f32 1.5, %v869
        %v871 = vmul.f32 %v866, %v870
        %vm872 = vweird.f32 %v862
        %vm873 = vweird.f32 %v866
        %vm874 = vmor %vm872, %vm873
        %v875 = vsel %vm874, %v866, %v871
        %v876 = vrsqrt.pop %v863
        %v877 = vmul.f32 %v876, %v863
        %v878 = vmul.f32 %v877, %v876
        %v879 = vmul.f32 0.5, %v878
        %v880 = vsub.f32 1.5, %v879
        %v881 = vmul.f32 %v876, %v880
        %vm882 = vweird.f32 %v863
        %vm883 = vweird.f32 %v876
        %vm884 = vmor %vm882, %vm883
        %v885 = vsel %vm884, %v876, %v881
        %v886 = vrsqrt.pop %v864
        %v887 = vmul.f32 %v886, %v864
        %v888 = vmul.f32 %v887, %v886
        %v889 = vmul.f32 0.5, %v888
        %v890 = vsub.f32 1.5, %v889
        %v891 = vmul.f32 %v886, %v890
        %vm892 = vweird.f32 %v864
        %vm893 = vweird.f32 %v886
        %vm894 = vmor %vm892, %vm893
        %v895 = vsel %vm894, %v886, %v891
        %v896 = vrsqrt.pop %v865
        %v897 = vmul.f32 %v896, %v865
        %v898 = vmul.f32 %v897, %v896
        %v899 = vmul.f32 0.5, %v898
        %v900 = vsub.f32 1.5, %v899
        %v901 = vmul.f32 %v896, %v900
        %vm902 = vweird.f32 %v865
        %vm903 = vweird.f32 %v896
        %vm904 = vmor %vm902, %vm903
        %v905 = vsel %vm904, %v896, %v901
        %v906 = vmul.f32 %v830, %v875
        %v907 = vmul.f32 %v831, %v875
        %v908 = vmul.f32 %v832, %v885
        %v909 = vmul.f32 %v833, %v885
        %v910 = vmul.f32 %v834, %v895
        %v911 = vmul.f32 %v835, %v895
        %v912 = vmul.f32 %v836, %v905
        %v913 = vmul.f32 %v837, %v905
        %915 = vset.pattern.permute.xlu0 0
        %916 = vperm.xlu0 %915, %v799
        %v917 = vpop.permute.xlu0 %916
        %920 = vset.pattern.permute.xlu0 0
        %921 = vperm.xlu0 %920, %v800
        %v922 = vpop.permute.xlu0 %921
        %925 = vset.pattern.permute.xlu0 0
        %926 = vperm.xlu0 %925, %v801
        %v927 = vpop.permute.xlu0 %926
        %930 = vset.pattern.permute.xlu0 0
        %931 = vperm.xlu0 %930, %v802
        %v932 = vpop.permute.xlu0 %931
        %v934 = vmul.f32 %v906, %v917
        %v935 = vmul.f32 %v907, %v917
        %v936 = vmul.f32 %v908, %v922
        %v937 = vmul.f32 %v909, %v922
        %v938 = vmul.f32 %v910, %v927
        %v939 = vmul.f32 %v911, %v927
        %v940 = vmul.f32 %v912, %v932
        %v941 = vmul.f32 %v913, %v932
        %943 = vset.pattern.permute.xlu0 0
        %944 = vperm.xlu0 %943, %v803
        %v945 = vpop.permute.xlu0 %944
        %948 = vset.pattern.permute.xlu0 0
        %949 = vperm.xlu0 %948, %v804
        %v950 = vpop.permute.xlu0 %949
        %953 = vset.pattern.permute.xlu0 0
        %954 = vperm.xlu0 %953, %v805
        %v955 = vpop.permute.xlu0 %954
        %958 = vset.pattern.permute.xlu0 0
        %959 = vperm.xlu0 %958, %v806
        %v960 = vpop.permute.xlu0 %959
        %v962 = vadd.f32 %v934, %v945
        %v963 = vadd.f32 %v935, %v945
        %v964 = vadd.f32 %v936, %v950
        %v965 = vadd.f32 %v937, %v950
        %v966 = vadd.f32 %v938, %v955
        %v967 = vadd.f32 %v939, %v955
        %v968 = vadd.f32 %v940, %v960
        %v969 = vadd.f32 %v941, %v960
        %v970 = vmax.f32 %v747, 0.0
        %v971 = vmax.f32 %v788, 0.0
        %v972 = vmax.f32 %v750, 0.0
        %v973 = vmax.f32 %v791, 0.0
        %v974 = vmax.f32 %v753, 0.0
        %v975 = vmax.f32 %v794, 0.0
        %v976 = vmax.f32 %v756, 0.0
        %v977 = vmax.f32 %v797, 0.0
        %v979 = vsel %vm613, %v635, 0
        %981 = vmatpush.msra.mxu0 0.0
        %982 = vmatpush.msra.mxu0 0.0
        %983 = vmatpush.msra.mxu0 0.0
        %984 = vmatpush.msra.mxu0 0.0
        %985 = vmatpush.msra.mxu0 0.0
        %986 = vmatpush.msra.mxu0 0.0
        %987 = vmatpush.msra.mxu0 0.0
        %988 = vmatpush.msra.mxu0 0.0
        %989 = vmatpush.msra.mxu0 0.0
        %990 = vmatpush.msra.mxu0 0.0
        %991 = vmatpush.msra.mxu0 0.0
        %992 = vmatpush.msra.mxu0 0.0
        %993 = vmatpush.msra.mxu0 %v968
        %994 = vmatpush.msra.mxu0 %v966
        %995 = vmatpush.msra.mxu0 %v964
        %996 = vmatpush.msra.mxu0 %v962
        %997 = vmatmul.f32.gmra.mxu0 %v979
        %v998 = vpop.f32.mrf.mxu0
        %v999 = vadd.f32 0.0, %v998
        %1000 = vdwg.mxu0
        %1001 = vmatpush.msra.mxu0 0.0
        %1002 = vmatpush.msra.mxu0 0.0
        %1003 = vmatpush.msra.mxu0 0.0
        %1004 = vmatpush.msra.mxu0 0.0
        %1005 = vmatpush.msra.mxu0 0.0
        %1006 = vmatpush.msra.mxu0 0.0
        %1007 = vmatpush.msra.mxu0 0.0
        %1008 = vmatpush.msra.mxu0 0.0
        %1009 = vmatpush.msra.mxu0 0.0
        %1010 = vmatpush.msra.mxu0 0.0
        %1011 = vmatpush.msra.mxu0 0.0
        %1012 = vmatpush.msra.mxu0 0.0
        %1013 = vmatpush.msra.mxu0 %v969
        %1014 = vmatpush.msra.mxu0 %v967
        %1015 = vmatpush.msra.mxu0 %v965
        %1016 = vmatpush.msra.mxu0 %v963
        %1017 = vmatmul.f32.gmra.mxu0 %v979
        %v1018 = vpop.f32.mrf.mxu0
        %v1019 = vadd.f32 0.0, %v1018
        %1020 = vdwg.mxu0
        %v1021 = vrot.slane %v999, 4
        %v1022 = vmax.f32 %v999, %v1021
        %v1023 = vrot.slane %v1022, 2
        %v1024 = vmax.f32 %v1022, %v1023
        %v1025 = vrot.slane %v1024, 1
        %v1026 = vmax.f32 %v1024, %v1025
        %v1027 = vrot.slane %v1019, 4
        %v1028 = vmax.f32 %v1019, %v1027
        %v1029 = vrot.slane %v1028, 2
        %v1030 = vmax.f32 %v1028, %v1029
        %v1031 = vrot.slane %v1030, 1
        %v1032 = vmax.f32 %v1030, %v1031
        %v1033 = vsub.f32 %v999, %v1026
        %v1034 = vsub.f32 %v1019, %v1032
        %v1035 = vmul.f32 %v1033, 1.442695
        %v1036 = vpow.pop %v1035
        %v1037 = vmul.f32 %v1034, 1.442695
        %v1038 = vpow.pop %v1037
        %v1039 = vrot.slane %v1036, 4
        %v1040 = vadd.f32 %v1036, %v1039
        %v1041 = vrot.slane %v1040, 2
        %v1042 = vadd.f32 %v1040, %v1041
        %v1043 = vrot.slane %v1042, 1
        %v1044 = vadd.f32 %v1042, %v1043
        %v1045 = vrot.slane %v1038, 4
        %v1046 = vadd.f32 %v1038, %v1045
        %v1047 = vrot.slane %v1046, 2
        %v1048 = vadd.f32 %v1046, %v1047
        %v1049 = vrot.slane %v1048, 1
        %v1050 = vadd.f32 %v1048, %v1049
        %v1051 = vrcp.pop %v1044
        %v1052 = vmul.f32 %v1044, %v1051
        %v1053 = vsub.f32 1.0, %v1052
        %v1054 = vmul.f32 %v1051, %v1053
        %v1055 = vadd.f32 %v1051, %v1054
        %vm1056 = vweird.f32 %v1044
        %vm1057 = vweird.f32 %v1051
        %vm1058 = vmor %vm1056, %vm1057
        %v1059 = vsel %vm1058, %v1051, %v1055
        %v1060 = vand.u32 2147483647, %v1044
        %vm1061 = vcmp.eq.f32.partialorder %v1060, 8.507059e+37
        %v1062 = vand.u32 %v1044, 2147483648
        %v1063 = vor.u32 1.1754944e-38, %v1062
        %v1064 = vsel %vm1061, %v1063, %v1059
        %v1065 = vrcp.pop %v1050
        %v1066 = vmul.f32 %v1050, %v1065
        %v1067 = vsub.f32 1.0, %v1066
        %v1068 = vmul.f32 %v1065, %v1067
        %v1069 = vadd.f32 %v1065, %v1068
        %vm1070 = vweird.f32 %v1050
        %vm1071 = vweird.f32 %v1065
        %vm1072 = vmor %vm1070, %vm1071
        %v1073 = vsel %vm1072, %v1065, %v1069
        %v1074 = vand.u32 2147483647, %v1050
        %vm1075 = vcmp.eq.f32.partialorder %v1074, 8.507059e+37
        %v1076 = vand.u32 %v1050, 2147483648
        %v1077 = vor.u32 1.1754944e-38, %v1076
        %v1078 = vsel %vm1075, %v1077, %v1073
        %v1079 = vmul.f32 %v1036, %v1064
        %v1080 = vmul.f32 %v1038, %v1078
        %1081 = vrot.lane.b32.xlu0 %v635, 96
        %v1082 = vpop.permute.xlu0 %1081
        %1084 = vxpose.xlu0.b32.start [1/16] %v1082, 128
        %1085 = vxpose.xlu0.b32.cont [2/16] 0.0, 128
        %1086 = vxpose.xlu0.b32.cont [3/16] 0.0, 128
        %1087 = vxpose.xlu0.b32.cont [4/16] 0.0, 128
        %1088 = vxpose.xlu0.b32.cont [5/16] 0.0, 128
        %1089 = vxpose.xlu0.b32.cont [6/16] 0.0, 128
        %1090 = vxpose.xlu0.b32.cont [7/16] 0.0, 128
        %1091 = vxpose.xlu0.b32.cont [8/16] 0.0, 128
        %1092 = vxpose.xlu0.b32.cont [9/16] 0.0, 128
        %1093 = vxpose.xlu0.b32.cont [10/16] 0.0, 128
        %1094 = vxpose.xlu0.b32.cont [11/16] 0.0, 128
        %1095 = vxpose.xlu0.b32.cont [12/16] 0.0, 128
        %1096 = vxpose.xlu0.b32.cont [13/16] 0.0, 128
        %1097 = vxpose.xlu0.b32.cont [14/16] 0.0, 128
        %1098 = vxpose.xlu0.b32.cont [15/16] 0.0, 128
        %1099 = vxpose.xlu0.b32.end [16/16] 0.0, 128
        %v1100 = vpop.trf.xlu0
        %v1101 = vpop.trf.xlu0
        %v1102 = vpop.trf.xlu0
        %v1103 = vpop.trf.xlu0
        %v1104 = vpop.trf.xlu0
        %v1105 = vpop.trf.xlu0
        %v1106 = vpop.trf.xlu0
        %v1107 = vpop.trf.xlu0
        %v1108 = vpop.trf.xlu0
        %v1109 = vpop.trf.xlu0
        %v1110 = vpop.trf.xlu0
        %v1111 = vpop.trf.xlu0
        %v1112 = vpop.trf.xlu0
        %v1113 = vpop.trf.xlu0
        %v1114 = vpop.trf.xlu0
        %v1115 = vpop.trf.xlu0
        %vm1116 = vcmask 64512
        %v1118 = vsel %vm1116, %v1100, 0
        %v1121 = vsel %vm1116, %v1101, 0
        %v1124 = vsel %vm1116, %v1102, 0
        %v1127 = vsel %vm1116, %v1103, 0
        %1129 = vmatpush.msra.mxu0 0.0
        %1130 = vmatpush.msra.mxu0 0.0
        %1131 = vmatpush.msra.mxu0 0.0
        %1132 = vmatpush.msra.mxu0 0.0
        %1133 = vmatpush.msra.mxu0 0.0
        %1134 = vmatpush.msra.mxu0 0.0
        %1135 = vmatpush.msra.mxu0 0.0
        %1136 = vmatpush.msra.mxu0 0.0
        %1137 = vmatpush.msra.mxu0 0.0
        %1138 = vmatpush.msra.mxu0 0.0
        %1139 = vmatpush.msra.mxu0 0.0
        %1140 = vmatpush.msra.mxu0 0.0
        %1141 = vmatpush.msra.mxu0 0.0
        %1142 = vmatpush.msra.mxu0 0.0
        %1143 = vmatpush.msra.mxu0 0.0
        %1144 = vmatpush.msra.mxu0 %v1079
        %1145 = vmatmul.f32.gmra.mxu0 %v1118
        %v1146 = vpop.f32.mrf.mxu0
        %v1147 = vadd.f32 0.0, %v1146
        %1148 = vmatmul.f32.gmra.mxu0 %v1121
        %v1149 = vpop.f32.mrf.mxu0
        %v1150 = vadd.f32 0.0, %v1149
        %1151 = vmatmul.f32.gmra.mxu0 %v1124
        %v1152 = vpop.f32.mrf.mxu0
        %v1153 = vadd.f32 0.0, %v1152
        %1154 = vmatmul.f32.gmra.mxu0 %v1127
        %v1155 = vpop.f32.mrf.mxu0
        %v1156 = vadd.f32 0.0, %v1155
        %1157 = vdwg.mxu0
        %1158 = vmatpush.msra.mxu0 0.0
        %1159 = vmatpush.msra.mxu0 0.0
        %1160 = vmatpush.msra.mxu0 0.0
        %1161 = vmatpush.msra.mxu0 0.0
        %1162 = vmatpush.msra.mxu0 0.0
        %1163 = vmatpush.msra.mxu0 0.0
        %1164 = vmatpush.msra.mxu0 0.0
        %1165 = vmatpush.msra.mxu0 0.0
        %1166 = vmatpush.msra.mxu0 0.0
        %1167 = vmatpush.msra.mxu0 0.0
        %1168 = vmatpush.msra.mxu0 0.0
        %1169 = vmatpush.msra.mxu0 0.0
        %1170 = vmatpush.msra.mxu0 0.0
        %1171 = vmatpush.msra.mxu0 0.0
        %1172 = vmatpush.msra.mxu0 0.0
        %1173 = vmatpush.msra.mxu0 %v1080
        %1174 = vmatmul.f32.gmra.mxu0 %v1118
        %v1175 = vpop.f32.mrf.mxu0
        %v1176 = vadd.f32 0.0, %v1175
        %1177 = vmatmul.f32.gmra.mxu0 %v1121
        %v1178 = vpop.f32.mrf.mxu0
        %v1179 = vadd.f32 0.0, %v1178
        %1180 = vmatmul.f32.gmra.mxu0 %v1124
        %v1181 = vpop.f32.mrf.mxu0
        %v1182 = vadd.f32 0.0, %v1181
        %1183 = vmatmul.f32.gmra.mxu0 %v1127
        %v1184 = vpop.f32.mrf.mxu0
        %v1185 = vadd.f32 0.0, %v1184
        %1186 = vdwg.mxu0
        %v1187 = vld [vmem:[%s6] sm:$0xff]
        %v1188 = vld [vmem:[%s6 + $0x8] sm:$0xff]
        %v1189 = vld [vmem:[%s6 + $0x10] sm:$0xff]
        %v1190 = vld [vmem:[%s6 + $0x18] sm:$0xff]
        %v1191 = vld [vmem:[%s7] sm:$0xff]
        %v1192 = vld [vmem:[%s7 + $0x8] sm:$0xff]
        %v1193 = vld [vmem:[%s7 + $0x10] sm:$0xff]
        %v1194 = vld [vmem:[%s7 + $0x18] sm:$0xff]
        %1196 = vset.pattern.permute.xlu0 0
        %1197 = vperm.xlu0 %1196, %v1191
        %v1198 = vpop.permute.xlu0 %1197
        %1201 = vset.pattern.permute.xlu0 0
        %1202 = vperm.xlu0 %1201, %v1192
        %v1203 = vpop.permute.xlu0 %1202
        %1206 = vset.pattern.permute.xlu0 0
        %1207 = vperm.xlu0 %1206, %v1193
        %v1208 = vpop.permute.xlu0 %1207
        %1211 = vset.pattern.permute.xlu0 0
        %1212 = vperm.xlu0 %1211, %v1194
        %v1213 = vpop.permute.xlu0 %1212
        %v1216 = vsel %vm613, %v1187, 0
        %v1219 = vsel %vm613, %v1188, 0
        %v1222 = vsel %vm613, %v1189, 0
        %v1225 = vsel %vm613, %v1190, 0
        %1227 = vmatpush.msra.mxu0 0.0
        %1228 = vmatpush.msra.mxu0 0.0
        %1229 = vmatpush.msra.mxu0 0.0
        %1230 = vmatpush.msra.mxu0 0.0
        %1231 = vmatpush.msra.mxu0 0.0
        %1232 = vmatpush.msra.mxu0 0.0
        %1233 = vmatpush.msra.mxu0 0.0
        %1234 = vmatpush.msra.mxu0 0.0
        %1235 = vmatpush.msra.mxu0 0.0
        %1236 = vmatpush.msra.mxu0 0.0
        %1237 = vmatpush.msra.mxu0 0.0
        %1238 = vmatpush.msra.mxu0 0.0
        %1239 = vmatpush.msra.mxu0 %v1156
        %1240 = vmatpush.msra.mxu0 %v1153
        %1241 = vmatpush.msra.mxu0 %v1150
        %1242 = vmatpush.msra.mxu0 %v1147
        %1243 = vmatmul.f32.gmra.mxu0 %v1216
        %v1244 = vpop.f32.mrf.mxu0
        %v1245 = vadd.f32 %v1198, %v1244
        %1246 = vmatmul.f32.gmra.mxu0 %v1219
        %v1247 = vpop.f32.mrf.mxu0
        %v1248 = vadd.f32 %v1203, %v1247
        %1249 = vmatmul.f32.gmra.mxu0 %v1222
        %v1250 = vpop.f32.mrf.mxu0
        %v1251 = vadd.f32 %v1208, %v1250
        %1252 = vmatmul.f32.gmra.mxu0 %v1225
        %v1253 = vpop.f32.mrf.mxu0
        %v1254 = vadd.f32 %v1213, %v1253
        %1255 = vdwg.mxu0
        %1256 = vmatpush.msra.mxu0 0.0
        %1257 = vmatpush.msra.mxu0 0.0
        %1258 = vmatpush.msra.mxu0 0.0
        %1259 = vmatpush.msra.mxu0 0.0
        %1260 = vmatpush.msra.mxu0 0.0
        %1261 = vmatpush.msra.mxu0 0.0
        %1262 = vmatpush.msra.mxu0 0.0
        %1263 = vmatpush.msra.mxu0 0.0
        %1264 = vmatpush.msra.mxu0 0.0
        %1265 = vmatpush.msra.mxu0 0.0
        %1266 = vmatpush.msra.mxu0 0.0
        %1267 = vmatpush.msra.mxu0 0.0
        %1268 = vmatpush.msra.mxu0 %v1185
        %1269 = vmatpush.msra.mxu0 %v1182
        %1270 = vmatpush.msra.mxu0 %v1179
        %1271 = vmatpush.msra.mxu0 %v1176
        %1272 = vmatmul.f32.gmra.mxu0 %v1216
        %v1273 = vpop.f32.mrf.mxu0
        %v1274 = vadd.f32 %v1198, %v1273
        %1275 = vmatmul.f32.gmra.mxu0 %v1219
        %v1276 = vpop.f32.mrf.mxu0
        %v1277 = vadd.f32 %v1203, %v1276
        %1278 = vmatmul.f32.gmra.mxu0 %v1222
        %v1279 = vpop.f32.mrf.mxu0
        %v1280 = vadd.f32 %v1208, %v1279
        %1281 = vmatmul.f32.gmra.mxu0 %v1225
        %v1282 = vpop.f32.mrf.mxu0
        %v1283 = vadd.f32 %v1213, %v1282
        %1284 = vdwg.mxu0
        %v1285 = vld [vmem:[%s12] sm:$0xff]
        %v1286 = vld [vmem:[%s12 + $0x8] sm:$0xff]
        %v1287 = vld [vmem:[%s12 + $0x10] sm:$0xff]
        %v1288 = vld [vmem:[%s12 + $0x18] sm:$0xff]
        %v1289 = vld [vmem:[%s13] sm:$0xff]
        %v1290 = vld [vmem:[%s13 + $0x8] sm:$0xff]
        %v1291 = vld [vmem:[%s13 + $0x10] sm:$0xff]
        %v1292 = vld [vmem:[%s13 + $0x18] sm:$0xff]
        %v1293 = vadd.f32 %v1245, %v1274
        %1294 = vadd.xlane.f32.xlu0 %v1293
        %v1295 = vpop.xlane.xlu0 %1294
        %v1296 = vadd.f32 %v1248, %v1277
        %1297 = vadd.xlane.f32.xlu0 %v1296
        %v1298 = vpop.xlane.xlu0 %1297
        %v1299 = vadd.f32 %v1251, %v1280
        %1300 = vadd.xlane.f32.xlu0 %v1299
        %v1301 = vpop.xlane.xlu0 %1300
        %v1302 = vadd.f32 %v1254, %v1283
        %1303 = vadd.xlane.f32.xlu0 %v1302
        %v1304 = vpop.xlane.xlu0 %1303
        %v1305 = vmul.f32 %v1295, %v825
        %v1306 = vmul.f32 %v1298, %v825
        %v1307 = vmul.f32 %v1301, %v825
        %v1308 = vmul.f32 %v1304, %v825
        %v1309 = vsub.f32 %v1245, %v1305
        %v1310 = vsub.f32 %v1274, %v1305
        %v1311 = vsub.f32 %v1248, %v1306
        %v1312 = vsub.f32 %v1277, %v1306
        %v1313 = vsub.f32 %v1251, %v1307
        %v1314 = vsub.f32 %v1280, %v1307
        %v1315 = vsub.f32 %v1254, %v1308
        %v1316 = vsub.f32 %v1283, %v1308
        %v1317 = vmul.f32 %v1309, %v1309
        %v1318 = vmul.f32 %v1310, %v1310
        %v1319 = vmul.f32 %v1311, %v1311
        %v1320 = vmul.f32 %v1312, %v1312
        %v1321 = vmul.f32 %v1313, %v1313
        %v1322 = vmul.f32 %v1314, %v1314
        %v1323 = vmul.f32 %v1315, %v1315
        %v1324 = vmul.f32 %v1316, %v1316
        %v1325 = vadd.f32 %v1317, %v1318
        %1326 = vadd.xlane.f32.xlu0 %v1325
        %v1327 = vpop.xlane.xlu0 %1326
        %v1328 = vadd.f32 %v1319, %v1320
        %1329 = vadd.xlane.f32.xlu0 %v1328
        %v1330 = vpop.xlane.xlu0 %1329
        %v1331 = vadd.f32 %v1321, %v1322
        %1332 = vadd.xlane.f32.xlu0 %v1331
        %v1333 = vpop.xlane.xlu0 %1332
        %v1334 = vadd.f32 %v1323, %v1324
        %1335 = vadd.xlane.f32.xlu0 %v1334
        %v1336 = vpop.xlane.xlu0 %1335
        %v1337 = vmul.f32 %v1327, %v825
        %v1338 = vmul.f32 %v1330, %v825
        %v1339 = vmul.f32 %v1333, %v825
        %v1340 = vmul.f32 %v1336, %v825
        %v1341 = vadd.f32 %v1337, 1e-05
        %v1342 = vadd.f32 %v1338, 1e-05
        %v1343 = vadd.f32 %v1339, 1e-05
        %v1344 = vadd.f32 %v1340, 1e-05
        %v1345 = vrsqrt.pop %v1341
        %v1346 = vmul.f32 %v1345, %v1341
        %v1347 = vmul.f32 %v1346, %v1345
        %v1348 = vmul.f32 0.5, %v1347
        %v1349 = vsub.f32 1.5, %v1348
        %v1350 = vmul.f32 %v1345, %v1349
        %vm1351 = vweird.f32 %v1341
        %vm1352 = vweird.f32 %v1345
        %vm1353 = vmor %vm1351, %vm1352
        %v1354 = vsel %vm1353, %v1345, %v1350
        %v1355 = vrsqrt.pop %v1342
        %v1356 = vmul.f32 %v1355, %v1342
        %v1357 = vmul.f32 %v1356, %v1355
        %v1358 = vmul.f32 0.5, %v1357
        %v1359 = vsub.f32 1.5, %v1358
        %v1360 = vmul.f32 %v1355, %v1359
        %vm1361 = vweird.f32 %v1342
        %vm1362 = vweird.f32 %v1355
        %vm1363 = vmor %vm1361, %vm1362
        %v1364 = vsel %vm1363, %v1355, %v1360
        %v1365 = vrsqrt.pop %v1343
        %v1366 = vmul.f32 %v1365, %v1343
        %v1367 = vmul.f32 %v1366, %v1365
        %v1368 = vmul.f32 0.5, %v1367
        %v1369 = vsub.f32 1.5, %v1368
        %v1370 = vmul.f32 %v1365, %v1369
        %vm1371 = vweird.f32 %v1343
        %vm1372 = vweird.f32 %v1365
        %vm1373 = vmor %vm1371, %vm1372
        %v1374 = vsel %vm1373, %v1365, %v1370
        %v1375 = vrsqrt.pop %v1344
        %v1376 = vmul.f32 %v1375, %v1344
        %v1377 = vmul.f32 %v1376, %v1375
        %v1378 = vmul.f32 0.5, %v1377
        %v1379 = vsub.f32 1.5, %v1378
        %v1380 = vmul.f32 %v1375, %v1379
        %vm1381 = vweird.f32 %v1344
        %vm1382 = vweird.f32 %v1375
        %vm1383 = vmor %vm1381, %vm1382
        %v1384 = vsel %vm1383, %v1375, %v1380
        %v1385 = vmul.f32 %v1309, %v1354
        %v1386 = vmul.f32 %v1310, %v1354
        %v1387 = vmul.f32 %v1311, %v1364
        %v1388 = vmul.f32 %v1312, %v1364
        %v1389 = vmul.f32 %v1313, %v1374
        %v1390 = vmul.f32 %v1314, %v1374
        %v1391 = vmul.f32 %v1315, %v1384
        %v1392 = vmul.f32 %v1316, %v1384
        %1394 = vset.pattern.permute.xlu0 0
        %1395 = vperm.xlu0 %1394, %v1285
        %v1396 = vpop.permute.xlu0 %1395
        %1399 = vset.pattern.permute.xlu0 0
        %1400 = vperm.xlu0 %1399, %v1286
        %v1401 = vpop.permute.xlu0 %1400
        %1404 = vset.pattern.permute.xlu0 0
        %1405 = vperm.xlu0 %1404, %v1287
        %v1406 = vpop.permute.xlu0 %1405
        %1409 = vset.pattern.permute.xlu0 0
        %1410 = vperm.xlu0 %1409, %v1288
        %v1411 = vpop.permute.xlu0 %1410
        %v1413 = vmul.f32 %v1385, %v1396
        %v1414 = vmul.f32 %v1386, %v1396
        %v1415 = vmul.f32 %v1387, %v1401
        %v1416 = vmul.f32 %v1388, %v1401
        %v1417 = vmul.f32 %v1389, %v1406
        %v1418 = vmul.f32 %v1390, %v1406
        %v1419 = vmul.f32 %v1391, %v1411
        %v1420 = vmul.f32 %v1392, %v1411
        %1422 = vset.pattern.permute.xlu0 0
        %1423 = vperm.xlu0 %1422, %v1289
        %v1424 = vpop.permute.xlu0 %1423
        %1427 = vset.pattern.permute.xlu0 0
        %1428 = vperm.xlu0 %1427, %v1290
        %v1429 = vpop.permute.xlu0 %1428
        %1432 = vset.pattern.permute.xlu0 0
        %1433 = vperm.xlu0 %1432, %v1291
        %v1434 = vpop.permute.xlu0 %1433
        %1437 = vset.pattern.permute.xlu0 0
        %1438 = vperm.xlu0 %1437, %v1292
        %v1439 = vpop.permute.xlu0 %1438
        %v1441 = vadd.f32 %v1413, %v1424
        %v1442 = vadd.f32 %v1414, %v1424
        %v1443 = vadd.f32 %v1415, %v1429
        %v1444 = vadd.f32 %v1416, %v1429
        %v1445 = vadd.f32 %v1417, %v1434
        %v1446 = vadd.f32 %v1418, %v1434
        %v1447 = vadd.f32 %v1419, %v1439
        %v1448 = vadd.f32 %v1420, %v1439
        %v1449 = vmax.f32 %v1441, 0.0
        %v1450 = vmax.f32 %v1442, 0.0
        %v1451 = vmax.f32 %v1443, 0.0
        %v1452 = vmax.f32 %v1444, 0.0
        %v1453 = vmax.f32 %v1445, 0.0
        %v1454 = vmax.f32 %v1446, 0.0
        %v1455 = vmax.f32 %v1447, 0.0
        %v1456 = vmax.f32 %v1448, 0.0
        %v1457 = vmul.f32 %v970, %v1449
        %v1458 = vmul.f32 %v971, %v1450
        %v1459 = vmul.f32 %v972, %v1451
        %v1460 = vmul.f32 %v973, %v1452
        %v1461 = vmul.f32 %v974, %v1453
        %v1462 = vmul.f32 %v975, %v1454
        %v1463 = vmul.f32 %v976, %v1455
        %v1464 = vmul.f32 %v977, %v1456
        %v1465 = vld [vmem:[%s8] sm:$0xff]
        %v1466 = vld [vmem:[%s8 + $0x8] sm:$0xff]
        %v1467 = vld [vmem:[%s8 + $0x10] sm:$0xff]
        %v1468 = vld [vmem:[%s8 + $0x18] sm:$0xff]
        %v1469 = vld [vmem:[%s9] sm:$0xff]
        %v1470 = vld [vmem:[%s9 + $0x8] sm:$0xff]
        %v1471 = vld [vmem:[%s9 + $0x10] sm:$0xff]
        %v1472 = vld [vmem:[%s9 + $0x18] sm:$0xff]
        %1474 = vset.pattern.permute.xlu0 0
        %1475 = vperm.xlu0 %1474, %v1469
        %v1476 = vpop.permute.xlu0 %1475
        %1479 = vset.pattern.permute.xlu0 0
        %1480 = vperm.xlu0 %1479, %v1470
        %v1481 = vpop.permute.xlu0 %1480
        %1484 = vset.pattern.permute.xlu0 0
        %1485 = vperm.xlu0 %1484, %v1471
        %v1486 = vpop.permute.xlu0 %1485
        %1489 = vset.pattern.permute.xlu0 0
        %1490 = vperm.xlu0 %1489, %v1472
        %v1491 = vpop.permute.xlu0 %1490
        %v1494 = vsel %vm613, %v1465, 0
        %v1497 = vsel %vm613, %v1466, 0
        %v1500 = vsel %vm613, %v1467, 0
        %v1503 = vsel %vm613, %v1468, 0
        %1505 = vmatpush.msra.mxu0 0.0
        %1506 = vmatpush.msra.mxu0 0.0
        %1507 = vmatpush.msra.mxu0 0.0
        %1508 = vmatpush.msra.mxu0 0.0
        %1509 = vmatpush.msra.mxu0 0.0
        %1510 = vmatpush.msra.mxu0 0.0
        %1511 = vmatpush.msra.mxu0 0.0
        %1512 = vmatpush.msra.mxu0 0.0
        %1513 = vmatpush.msra.mxu0 0.0
        %1514 = vmatpush.msra.mxu0 0.0
        %1515 = vmatpush.msra.mxu0 0.0
        %1516 = vmatpush.msra.mxu0 0.0
        %1517 = vmatpush.msra.mxu0 %v1463
        %1518 = vmatpush.msra.mxu0 %v1461
        %1519 = vmatpush.msra.mxu0 %v1459
        %1520 = vmatpush.msra.mxu0 %v1457
        %1521 = vmatmul.f32.gmra.mxu0 %v1494
        %v1522 = vpop.f32.mrf.mxu0
        %v1523 = vadd.f32 %v1476, %v1522
        %1524 = vmatmul.f32.gmra.mxu0 %v1497
        %v1525 = vpop.f32.mrf.mxu0
        %v1526 = vadd.f32 %v1481, %v1525
        %1527 = vmatmul.f32.gmra.mxu0 %v1500
        %v1528 = vpop.f32.mrf.mxu0
        %v1529 = vadd.f32 %v1486, %v1528
        %1530 = vmatmul.f32.gmra.mxu0 %v1503
        %v1531 = vpop.f32.mrf.mxu0
        %v1532 = vadd.f32 %v1491, %v1531
        %1533 = vdwg.mxu0
        %1534 = vmatpush.msra.mxu0 0.0
        %1535 = vmatpush.msra.mxu0 0.0
        %1536 = vmatpush.msra.mxu0 0.0
        %1537 = vmatpush.msra.mxu0 0.0
        %1538 = vmatpush.msra.mxu0 0.0
        %1539 = vmatpush.msra.mxu0 0.0
        %1540 = vmatpush.msra.mxu0 0.0
        %1541 = vmatpush.msra.mxu0 0.0
        %1542 = vmatpush.msra.mxu0 0.0
        %1543 = vmatpush.msra.mxu0 0.0
        %1544 = vmatpush.msra.mxu0 0.0
        %1545 = vmatpush.msra.mxu0 0.0
        %1546 = vmatpush.msra.mxu0 %v1464
        %1547 = vmatpush.msra.mxu0 %v1462
        %1548 = vmatpush.msra.mxu0 %v1460
        %1549 = vmatpush.msra.mxu0 %v1458
        %1550 = vmatmul.f32.gmra.mxu0 %v1494
        %v1551 = vpop.f32.mrf.mxu0
        %v1552 = vadd.f32 %v1476, %v1551
        %1553 = vmatmul.f32.gmra.mxu0 %v1497
        %v1554 = vpop.f32.mrf.mxu0
        %v1555 = vadd.f32 %v1481, %v1554
        %1556 = vmatmul.f32.gmra.mxu0 %v1500
        %v1557 = vpop.f32.mrf.mxu0
        %v1558 = vadd.f32 %v1486, %v1557
        %1559 = vmatmul.f32.gmra.mxu0 %v1503
        %v1560 = vpop.f32.mrf.mxu0
        %v1561 = vadd.f32 %v1491, %v1560
        %1562 = vdwg.mxu0
        %s1563 = smul.u32 %s34, 8
        %s1564 = smul.addr %s1563, 8
        %s1565 = scalar_lea.vmem [#allocation2], %s1564
        %1566 = vst [vmem:[%s1565] sm:$0xff] %v1523
        %1567 = vst [vmem:[%s1565 + $0x8] sm:$0xff] %v1552
        %1568 = vst [vmem:[%s1565 + $0x10] sm:$0xff] %v1526
        %1569 = vst [vmem:[%s1565 + $0x18] sm:$0xff] %v1555
        %1570 = vst [vmem:[%s1565 + $0x20] sm:$0xff] %v1529
        %1571 = vst [vmem:[%s1565 + $0x28] sm:$0xff] %v1558
        %1572 = vst [vmem:[%s1565 + $0x30] sm:$0xff] %v1532
        %1573 = vst [vmem:[%s1565 + $0x38] sm:$0xff] %v1561
        %1574 = vst [vmem:[%s578] sm:$0xff] %v1523
        %1575 = vst [vmem:[%s578 + $0x8] sm:$0xff] %v1552
        %1576 = vst [vmem:[%s578 + $0x10] sm:$0xff] %v1526
        %1577 = vst [vmem:[%s578 + $0x18] sm:$0xff] %v1555
        %1578 = vst [vmem:[%s578 + $0x20] sm:$0xff] %v1529
        %1579 = vst [vmem:[%s578 + $0x28] sm:$0xff] %v1558
        %1580 = vst [vmem:[%s578 + $0x30] sm:$0xff] %v1532
        %1581 = vst [vmem:[%s578 + $0x38] sm:$0xff] %v1561
        %v1582 = vld [vmem:[#allocation3] sm:$0xff]
        %v1583 = vld [vmem:[#allocation3 + $0x8] sm:$0xff]
        %v1584 = vld [vmem:[#allocation3 + $0x10] sm:$0xff]
        %v1585 = vld [vmem:[#allocation3 + $0x18] sm:$0xff]
        %v1586 = vadd.f32 %v1523, %v1552
        %1587 = vadd.xlane.f32.xlu0 %v1586
        %v1588 = vpop.xlane.xlu0 %1587
        %v1589 = vadd.f32 %v1526, %v1555
        %1590 = vadd.xlane.f32.xlu0 %v1589
        %v1591 = vpop.xlane.xlu0 %1590
        %v1592 = vadd.f32 %v1529, %v1558
        %1593 = vadd.xlane.f32.xlu0 %v1592
        %v1594 = vpop.xlane.xlu0 %1593
        %v1595 = vadd.f32 %v1532, %v1561
        %1596 = vadd.xlane.f32.xlu0 %v1595
        %v1597 = vpop.xlane.xlu0 %1596
        %v1598 = vadd.f32 %v1582, %v1588
        %v1599 = vadd.f32 %v1583, %v1591
        %v1600 = vadd.f32 %v1584, %v1594
        %v1601 = vadd.f32 %v1585, %v1597
        %vm1602 = vcmask 7168
        %1603 = vst.msk [vmem:[#allocation3] sm:$0xff] %vm1602, %v1598
        %1604 = vst.msk [vmem:[#allocation3 + $0x8] sm:$0xff] %vm1602, %v1599
        %1605 = vst.msk [vmem:[#allocation3 + $0x10] sm:$0xff] %vm1602, %v1600
        %1606 = vst.msk [vmem:[#allocation3 + $0x18] sm:$0xff] %vm1602, %v1601
        %v1607 = vld [vmem:[#allocation4] sm:$0xff]
        %v1608 = vld [vmem:[#allocation4 + $0x8] sm:$0xff]
        %v1609 = vld [vmem:[#allocation4 + $0x10] sm:$0xff]
        %v1610 = vld [vmem:[#allocation4 + $0x18] sm:$0xff]
        %v1611 = vmul.f32 %v1523, %v1523
        %v1612 = vmul.f32 %v1552, %v1552
        %v1613 = vmul.f32 %v1526, %v1526
        %v1614 = vmul.f32 %v1555, %v1555
        %v1615 = vmul.f32 %v1529, %v1529
        %v1616 = vmul.f32 %v1558, %v1558
        %v1617 = vmul.f32 %v1532, %v1532
        %v1618 = vmul.f32 %v1561, %v1561
        %v1619 = vadd.f32 %v1611, %v1612
        %1620 = vadd.xlane.f32.xlu0 %v1619
        %v1621 = vpop.xlane.xlu0 %1620
        %v1622 = vadd.f32 %v1613, %v1614
        %1623 = vadd.xlane.f32.xlu0 %v1622
        %v1624 = vpop.xlane.xlu0 %1623
        %v1625 = vadd.f32 %v1615, %v1616
        %1626 = vadd.xlane.f32.xlu0 %v1625
        %v1627 = vpop.xlane.xlu0 %1626
        %v1628 = vadd.f32 %v1617, %v1618
        %1629 = vadd.xlane.f32.xlu0 %v1628
        %v1630 = vpop.xlane.xlu0 %1629
        %v1631 = vadd.f32 %v1607, %v1621
        %v1632 = vadd.f32 %v1608, %v1624
        %v1633 = vadd.f32 %v1609, %v1627
        %v1634 = vadd.f32 %v1610, %v1630
        %1635 = vst.msk [vmem:[#allocation4] sm:$0xff] %vm1602, %v1631
        %1636 = vst.msk [vmem:[#allocation4 + $0x8] sm:$0xff] %vm1602, %v1632
        %1637 = vst.msk [vmem:[#allocation4 + $0x10] sm:$0xff] %vm1602, %v1633
        %1638 = vst.msk [vmem:[#allocation4 + $0x18] sm:$0xff] %vm1602, %v1634
        %p1639 = scmp.eq.s32.totalorder %s34, 1
        // Predicated region
        $region97: #{word_visual_attention.1} parent=91 // pred_check
          %p1640 = pneg %p1639
        $region98: #{word_visual_attention.1} parent=91 // pred_check_branch
          %1642 = sbr.rel (%p1640) target = $region100
        $region99: #{word_visual_attention.1} parent=91 // pred_region
          %v1643 = vld [vmem:[#allocation3] sm:$0xff]
          %v1644 = vld [vmem:[#allocation3 + $0x8] sm:$0xff]
          %v1645 = vld [vmem:[#allocation3 + $0x10] sm:$0xff]
          %v1646 = vld [vmem:[#allocation3 + $0x18] sm:$0xff]
          %v1647 = vmul.f32 %v1643, 0.001953125
          %v1648 = vmul.f32 %v1644, 0.001953125
          %v1649 = vmul.f32 %v1645, 0.001953125
          %v1650 = vmul.f32 %v1646, 0.001953125
          %v1651 = vld [vmem:[#allocation4] sm:$0xff]
          %v1652 = vld [vmem:[#allocation4 + $0x8] sm:$0xff]
          %v1653 = vld [vmem:[#allocation4 + $0x10] sm:$0xff]
          %v1654 = vld [vmem:[#allocation4 + $0x18] sm:$0xff]
          %v1655 = vmul.f32 %v1651, 0.001953125
          %v1656 = vmul.f32 %v1652, 0.001953125
          %v1657 = vmul.f32 %v1653, 0.001953125
          %v1658 = vmul.f32 %v1654, 0.001953125
          %v1659 = vmul.f32 %v1647, %v1647
          %v1660 = vmul.f32 %v1648, %v1648
          %v1661 = vmul.f32 %v1649, %v1649
          %v1662 = vmul.f32 %v1650, %v1650
          %v1663 = vsub.f32 %v1655, %v1659
          %v1664 = vsub.f32 %v1656, %v1660
          %v1665 = vsub.f32 %v1657, %v1661
          %v1666 = vsub.f32 %v1658, %v1662
          %v1667 = vld [vmem:[%s14] sm:$0xff]
          %v1668 = vld [vmem:[%s14 + $0x8] sm:$0xff]
          %v1669 = vld [vmem:[%s14 + $0x10] sm:$0xff]
          %v1670 = vld [vmem:[%s14 + $0x18] sm:$0xff]
          %v1671 = vadd.f32 %v1663, 1e-05
          %v1672 = vadd.f32 %v1664, 1e-05
          %v1673 = vadd.f32 %v1665, 1e-05
          %v1674 = vadd.f32 %v1666, 1e-05
          %v1675 = vrsqrt.pop %v1671
          %v1676 = vmul.f32 %v1675, %v1671
          %v1677 = vmul.f32 %v1676, %v1675
          %v1678 = vmul.f32 0.5, %v1677
          %v1679 = vsub.f32 1.5, %v1678
          %v1680 = vmul.f32 %v1675, %v1679
          %vm1681 = vweird.f32 %v1671
          %vm1682 = vweird.f32 %v1675
          %vm1683 = vmor %vm1681, %vm1682
          %v1684 = vsel %vm1683, %v1675, %v1680
          %v1685 = vrsqrt.pop %v1672
          %v1686 = vmul.f32 %v1685, %v1672
          %v1687 = vmul.f32 %v1686, %v1685
          %v1688 = vmul.f32 0.5, %v1687
          %v1689 = vsub.f32 1.5, %v1688
          %v1690 = vmul.f32 %v1685, %v1689
          %vm1691 = vweird.f32 %v1672
          %vm1692 = vweird.f32 %v1685
          %vm1693 = vmor %vm1691, %vm1692
          %v1694 = vsel %vm1693, %v1685, %v1690
          %v1695 = vrsqrt.pop %v1673
          %v1696 = vmul.f32 %v1695, %v1673
          %v1697 = vmul.f32 %v1696, %v1695
          %v1698 = vmul.f32 0.5, %v1697
          %v1699 = vsub.f32 1.5, %v1698
          %v1700 = vmul.f32 %v1695, %v1699
          %vm1701 = vweird.f32 %v1673
          %vm1702 = vweird.f32 %v1695
          %vm1703 = vmor %vm1701, %vm1702
          %v1704 = vsel %vm1703, %v1695, %v1700
          %v1705 = vrsqrt.pop %v1674
          %v1706 = vmul.f32 %v1705, %v1674
          %v1707 = vmul.f32 %v1706, %v1705
          %v1708 = vmul.f32 0.5, %v1707
          %v1709 = vsub.f32 1.5, %v1708
          %v1710 = vmul.f32 %v1705, %v1709
          %vm1711 = vweird.f32 %v1674
          %vm1712 = vweird.f32 %v1705
          %vm1713 = vmor %vm1711, %vm1712
          %v1714 = vsel %vm1713, %v1705, %v1710
          %v1715 = vmul.f32 %v1667, %v1684
          %v1716 = vmul.f32 %v1668, %v1694
          %v1717 = vmul.f32 %v1669, %v1704
          %v1718 = vmul.f32 %v1670, %v1714
          %1719 = vst.msk [vmem:[#allocation5] sm:$0xff] %vm1602, %v1715
          %1720 = vst.msk [vmem:[#allocation5 + $0x8] sm:$0xff] %vm1602, %v1716
          %1721 = vst.msk [vmem:[#allocation5 + $0x10] sm:$0xff] %vm1602, %v1717
          %1722 = vst.msk [vmem:[#allocation5 + $0x18] sm:$0xff] %vm1602, %v1718
          %v1723 = vld [vmem:[%s15] sm:$0xff]
          %v1724 = vld [vmem:[%s15 + $0x8] sm:$0xff]
          %v1725 = vld [vmem:[%s15 + $0x10] sm:$0xff]
          %v1726 = vld [vmem:[%s15 + $0x18] sm:$0xff]
          %v1727 = vmul.f32 %v1647, %v1715
          %v1728 = vmul.f32 %v1648, %v1716
          %v1729 = vmul.f32 %v1649, %v1717
          %v1730 = vmul.f32 %v1650, %v1718
          %v1731 = vsub.f32 %v1723, %v1727
          %v1732 = vsub.f32 %v1724, %v1728
          %v1733 = vsub.f32 %v1725, %v1729
          %v1734 = vsub.f32 %v1726, %v1730
          %1735 = vst.msk [vmem:[#allocation6] sm:$0xff] %vm1602, %v1731
          %1736 = vst.msk [vmem:[#allocation6 + $0x8] sm:$0xff] %vm1602, %v1732
          %1737 = vst.msk [vmem:[#allocation6 + $0x10] sm:$0xff] %vm1602, %v1733
          %1738 = vst.msk [vmem:[#allocation6 + $0x18] sm:$0xff] %vm1602, %v1734
        $region100: #{word_visual_attention.1} parent=91 // pred_fallthru
          _
      $region92: #{word_visual_attention.1} parent=87 // pred_fallthru
        _
      %p1739 = scmp.eq.s32.totalorder %s33, 1
      // Predicated region
      $region101: #{word_visual_attention.1} parent=87 // pred_check
        %p1740 = pneg %p1739
      $region102: #{word_visual_attention.1} parent=87 // pred_check_branch
        %1742 = sbr.rel (%p1740) target = $region104
      $region103: #{word_visual_attention.1} parent=87 // pred_region
        %s1743 = smul.u32 %s34, 8
        %s1744 = smul.addr %s1743, 8
        %s1745 = scalar_lea.vmem [#allocation2], %s1744
        %v1746 = vld [vmem:[%s1745] sm:$0xff]
        %v1747 = vld [vmem:[%s1745 + $0x8] sm:$0xff]
        %v1748 = vld [vmem:[%s1745 + $0x10] sm:$0xff]
        %v1749 = vld [vmem:[%s1745 + $0x18] sm:$0xff]
        %v1750 = vld [vmem:[%s1745 + $0x20] sm:$0xff]
        %v1751 = vld [vmem:[%s1745 + $0x28] sm:$0xff]
        %v1752 = vld [vmem:[%s1745 + $0x30] sm:$0xff]
        %v1753 = vld [vmem:[%s1745 + $0x38] sm:$0xff]
        %v1754 = vld [vmem:[#allocation5] sm:$0xff]
        %v1755 = vld [vmem:[#allocation5 + $0x8] sm:$0xff]
        %v1756 = vld [vmem:[#allocation5 + $0x10] sm:$0xff]
        %v1757 = vld [vmem:[#allocation5 + $0x18] sm:$0xff]
        %1759 = vset.pattern.permute.xlu0 0
        %1760 = vperm.xlu0 %1759, %v1754
        %v1761 = vpop.permute.xlu0 %1760
        %1764 = vset.pattern.permute.xlu0 0
        %1765 = vperm.xlu0 %1764, %v1755
        %v1766 = vpop.permute.xlu0 %1765
        %1769 = vset.pattern.permute.xlu0 0
        %1770 = vperm.xlu0 %1769, %v1756
        %v1771 = vpop.permute.xlu0 %1770
        %1774 = vset.pattern.permute.xlu0 0
        %1775 = vperm.xlu0 %1774, %v1757
        %v1776 = vpop.permute.xlu0 %1775
        %v1778 = vmul.f32 %v1746, %v1761
        %v1779 = vmul.f32 %v1747, %v1761
        %v1780 = vmul.f32 %v1748, %v1766
        %v1781 = vmul.f32 %v1749, %v1766
        %v1782 = vmul.f32 %v1750, %v1771
        %v1783 = vmul.f32 %v1751, %v1771
        %v1784 = vmul.f32 %v1752, %v1776
        %v1785 = vmul.f32 %v1753, %v1776
        %v1786 = vld [vmem:[#allocation6] sm:$0xff]
        %v1787 = vld [vmem:[#allocation6 + $0x8] sm:$0xff]
        %v1788 = vld [vmem:[#allocation6 + $0x10] sm:$0xff]
        %v1789 = vld [vmem:[#allocation6 + $0x18] sm:$0xff]
        %1791 = vset.pattern.permute.xlu0 0
        %1792 = vperm.xlu0 %1791, %v1786
        %v1793 = vpop.permute.xlu0 %1792
        %1796 = vset.pattern.permute.xlu0 0
        %1797 = vperm.xlu0 %1796, %v1787
        %v1798 = vpop.permute.xlu0 %1797
        %1801 = vset.pattern.permute.xlu0 0
        %1802 = vperm.xlu0 %1801, %v1788
        %v1803 = vpop.permute.xlu0 %1802
        %1806 = vset.pattern.permute.xlu0 0
        %1807 = vperm.xlu0 %1806, %v1789
        %v1808 = vpop.permute.xlu0 %1807
        %v1810 = vadd.f32 %v1778, %v1793
        %v1811 = vadd.f32 %v1779, %v1793
        %v1812 = vadd.f32 %v1780, %v1798
        %v1813 = vadd.f32 %v1781, %v1798
        %v1814 = vadd.f32 %v1782, %v1803
        %v1815 = vadd.f32 %v1783, %v1803
        %v1816 = vadd.f32 %v1784, %v1808
        %v1817 = vadd.f32 %v1785, %v1808
        %s1818 = sld [smem:[#allocation7]]
        %vm1819 = vcmp.ge.f32.partialorder %v1810, 0.0
        %vm1820 = vcmp.ge.f32.partialorder %v1811, 0.0
        %vm1821 = vcmp.ge.f32.partialorder %v1812, 0.0
        %vm1822 = vcmp.ge.f32.partialorder %v1813, 0.0
        %vm1823 = vcmp.ge.f32.partialorder %v1814, 0.0
        %vm1824 = vcmp.ge.f32.partialorder %v1815, 0.0
        %vm1825 = vcmp.ge.f32.partialorder %v1816, 0.0
        %vm1826 = vcmp.ge.f32.partialorder %v1817, 0.0
        %v1827 = vstv %s1818
        %v1828 = vmul.f32 %v1827, %v1810
        %v1829 = vmul.f32 %v1827, %v1811
        %v1830 = vmul.f32 %v1827, %v1812
        %v1831 = vmul.f32 %v1827, %v1813
        %v1832 = vmul.f32 %v1827, %v1814
        %v1833 = vmul.f32 %v1827, %v1815
        %v1834 = vmul.f32 %v1827, %v1816
        %v1835 = vmul.f32 %v1827, %v1817
        %v1836 = vsel %vm1819, %v1810, %v1828
        %v1837 = vsel %vm1820, %v1811, %v1829
        %v1838 = vsel %vm1821, %v1812, %v1830
        %v1839 = vsel %vm1822, %v1813, %v1831
        %v1840 = vsel %vm1823, %v1814, %v1832
        %v1841 = vsel %vm1824, %v1815, %v1833
        %v1842 = vsel %vm1825, %v1816, %v1834
        %v1843 = vsel %vm1826, %v1817, %v1835
        %1844 = vst [vmem:[%s578] sm:$0xff] %v1836
        %1845 = vst [vmem:[%s578 + $0x8] sm:$0xff] %v1837
        %1846 = vst [vmem:[%s578 + $0x10] sm:$0xff] %v1838
        %1847 = vst [vmem:[%s578 + $0x18] sm:$0xff] %v1839
        %1848 = vst [vmem:[%s578 + $0x20] sm:$0xff] %v1840
        %1849 = vst [vmem:[%s578 + $0x28] sm:$0xff] %v1841
        %1850 = vst [vmem:[%s578 + $0x30] sm:$0xff] %v1842
        %1851 = vst [vmem:[%s578 + $0x38] sm:$0xff] %v1843
      $region104: #{word_visual_attention.1} parent=87 // pred_fallthru
        _
      %p1852 = scmp.lt.s32.totalorder %s34, 1
      %s1853 = scalar_select %p1852, %s34, 1
      %s1854 = smul.addr %s1853, 8
      %s1855 = smul.addr %s1854, 8
      %s1856 = scalar_lea.vmem %s17, %s1855
      // Predicated region
      $region105: #{word_visual_attention.1} parent=87 // pred_check
        %p1857 = pneg %p426
      $region106: #{word_visual_attention.1} parent=87 // pred_check_branch
        %1859 = sbr.rel (%p1857) target = $region108
      $region107: #{word_visual_attention.1} parent=87 // pred_region
        _
      $region108: #{word_visual_attention.1} parent=87 // pred_fallthru
        _
    $region88: #{word_visual_attention.1} parent=5 // pred_fallthru
      _
    %p1860 = scmp.le.s32.totalorder 2, %s24
    // Predicated region
    $region109: #{word_visual_attention.1} parent=5 // pred_check
      %p1861 = pneg %p1860
    $region110: #{word_visual_attention.1} parent=5 // pred_check_branch
      %1863 = sbr.rel (%p1861) target = $region112
    $region111: #{word_visual_attention.1} parent=5 // pred_region
      %s1864 = ssub.s32 %s24, 2
      // Predicated region
      $region113: #{word_visual_attention.1} parent=111 // pred_check
        %p1865 = pneg %p432
      $region114: #{word_visual_attention.1} parent=111 // pred_check_branch
        %1867 = sbr.rel (%p1865) target = $region116
      $region115: #{word_visual_attention.1} parent=111 // pred_region
        %p1868 = scmp.lt.s32.totalorder %s36, 1
        %s1869 = scalar_select %p1868, %s36, 1
        %s1870 = smul.addr %s1869, 8
        %s1871 = smul.addr %s1870, 8
        %s1872 = scalar_lea.vmem %s17, %s1871
      $region116: #{word_visual_attention.1} parent=111 // pred_fallthru
        _
    $region112: #{word_visual_attention.1} parent=5 // pred_fallthru
      _
  $region6: #{word_visual_attention.1} parent=0 // loop_footer
    %s28 = sadd.s32 1, %s24
  $region7: #{word_visual_attention.1} parent=0 // loop_footer_branch
    %23 = sbr.rel target = $region3
  $region8: #{word_visual_attention.1} parent=0 // loop_exit
    _

</llo_original>
